<compile_context>
chip_gen: v6e
topology: v6e:2x2x1
jax: 0.10.0
libtpu: 0.0.40
codegen_flags: <defaults>
</compile_context>

<pallas_src>
import functools

import jax
import jax.numpy as jnp
from jax.experimental import pallas as pl
from jax.experimental.pallas import tpu as pltpu


def _rnn_kernel(n_layers, seq_len,
                x_ref, wih0_ref, wihr_ref, whh_ref, b_ref, wfc_ref, bfc_ref,
                o_ref,
                top_scr):
    """Whole-sequence stacked tanh-RNN + fused FC head in one invocation."""
    hidden = whh_ref.shape[-1]

    # Fused biases (b_ih + b_hh) per layer, loaded once.
    b = b_ref[...]                                           # (n_layers, H)

    # ---- Hoisted layer-0 input projection for ALL time steps:
    #      one (seq, state_dim) @ (state_dim, H) matmul + bias fold.
    xproj = (jnp.dot(x_ref[...], wih0_ref[...],
                     preferred_element_type=jnp.float32)
             + b[0:1, :])                                    # (seq, H)

    # Hidden state h_{-1} = 0 for every layer (matches init_hidden()),
    # carried entirely in vregs (no VMEM round-trips on the critical path).
    h = [jnp.zeros((1, hidden), jnp.float32) for _ in range(n_layers)]

    # Fully unrolled static time loop: the LLO scheduler sees the whole
    # recurrence and can overlap MXU pushes, EUP tanh and VPU adds.
    for t in range(seq_len):
        # layer 0: h0_t = tanh(xproj_t + h0_{t-1} @ W_hh0)
        h0 = jnp.tanh(
            xproj[t:t + 1, :]
            + jnp.dot(h[0], whh_ref[0], preferred_element_type=jnp.float32))
        h[0] = h0
        inp = h0

        # layers 1..n_layers-1 (input = freshly updated layer below)
        for l in range(1, n_layers):
            # TODO(synk): the two M=1 dots could be fused via a lane-concat of
            # [inp, h[l]] against a pre-concatenated [W_ih_l; W_hh_l]; kept as
            # two dots for lowering robustness (negligible at these sizes).
            hl = jnp.tanh(
                jnp.dot(inp, wihr_ref[l - 1],
                        preferred_element_type=jnp.float32)
                + jnp.dot(h[l], whh_ref[l],
                          preferred_element_type=jnp.float32)
                + b[l:l + 1, :])
            h[l] = hl
            inp = hl

        # Stage top-layer output for the batched FC head (write-only scratch).
        top_scr[pl.ds(t, 1), :] = inp

    # ---- Batched FC head + output activation (tanh), one lane-dense store.
    y = (jnp.dot(top_scr[...], wfc_ref[...],
                 preferred_element_type=jnp.float32)
         + bfc_ref[...])
    o_ref[...] = jnp.tanh(y).astype(o_ref.dtype)


def rnn_forward(states, params, *, n_layers, hidden_size, output_size):
    """states: (seq_len, 1, state_dim) float32 -> (seq_len, output_size)."""
    seq_len, batch, state_dim = states.shape
    assert batch == 1, "module's init_hidden() hard-codes batch=1"

    x2d = states.reshape(seq_len, state_dim)

    w_ih0 = params["w_ih0"]                      # (state_dim, hidden)
    w_ih_rest = params["w_ih_rest"]              # (n_layers-1, hidden, hidden)
    if n_layers == 1:                            # keep a non-empty placeholder
        w_ih_rest = jnp.zeros((1, hidden_size, hidden_size), jnp.float32)
    w_hh = params["w_hh"]                        # (n_layers, hidden, hidden)
    b_fused = params["b_ih"] + params["b_hh"]    # (n_layers, hidden), folded once
    w_fc = params["w_fc"]                        # (hidden, output)
    b_fc = params["b_fc"]                        # (1, output)

    kernel = functools.partial(_rnn_kernel, n_layers, seq_len)

    vmem_spec = lambda: pl.BlockSpec(memory_space=pltpu.MemorySpace.VMEM)

    out = pl.pallas_call(
        kernel,
        out_shape=jax.ShapeDtypeStruct((seq_len, output_size), jnp.float32),
        in_specs=[vmem_spec() for _ in range(7)],     # whole arrays, single DMA each
        out_specs=vmem_spec(),
        scratch_shapes=[pltpu.VMEM((seq_len, hidden_size), jnp.float32)],
    )(x2d, w_ih0, w_ih_rest, w_hh, b_fused, w_fc, b_fc)

    # out.contiguous().view(-1, hidden) -> fc -> act  => (seq_len*1, output_size)
    return out


def rnn_forward_reference(states, params, *, n_layers, hidden_size, output_size):
    """Pure-JAX reference mirroring torch.nn.RNN(tanh) + Linear + tanh."""
    seq_len, _, state_dim = states.shape
    h = jnp.zeros((n_layers, hidden_size), jnp.float32)
    outs = []
    for t in range(seq_len):
        x = states[t, 0]
        new_h = []
        inp = x
        for l in range(n_layers):
            w_ih = params["w_ih0"] if l == 0 else params["w_ih_rest"][l - 1]
            a = inp @ w_ih + params["b_ih"][l] + h[l] @ params["w_hh"][l] + params["b_hh"][l]
            hl = jnp.tanh(a)
            new_h.append(hl)
            inp = hl
        h = jnp.stack(new_h)
        outs.append(inp)
    out = jnp.stack(outs)                       # (seq, hidden)
    y = out @ params["w_fc"] + params["b_fc"][0]
    return jnp.tanh(y)


def init_params(key, state_dim, hidden_size, n_layers, output_size):
    """Deterministic init with torch-like U(-1/sqrt(H), 1/sqrt(H)) bounds."""
    bound = 1.0 / jnp.sqrt(jnp.float32(hidden_size))
    keys = jax.random.split(key, 7)
    u = lambda k, shape: jax.random.uniform(k, shape, jnp.float32, -bound, bound)
    return {
        "w_ih0": u(keys[0], (state_dim, hidden_size)),
        "w_ih_rest": u(keys[1], (n_layers - 1, hidden_size, hidden_size)),
        "w_hh": u(keys[2], (n_layers, hidden_size, hidden_size)),
        "b_ih": u(keys[3], (n_layers, hidden_size)),
        "b_hh": u(keys[4], (n_layers, hidden_size)),
        "w_fc": u(keys[5], (hidden_size, output_size)),
        "b_fc": u(keys[6], (1, output_size)),
    }


if __name__ == "__main__":
    # Small shapes consistent with the module: seq=8, batch=1 (forced by
    # init_hidden), state_dim=16, hidden=32, n_layers=2, output=8.
    SEQ, STATE_DIM, HIDDEN, N_LAYERS, OUTPUT = 8, 16, 32, 2, 8

    key = jax.random.PRNGKey(0)
    k_states, k_params = jax.random.split(key)
    states = jax.random.normal(k_states, (SEQ, 1, STATE_DIM), jnp.float32)
    params = init_params(k_params, STATE_DIM, HIDDEN, N_LAYERS, OUTPUT)

    out = rnn_forward(states, params, n_layers=N_LAYERS,
                      hidden_size=HIDDEN, output_size=OUTPUT)
    out = jax.block_until_ready(out)

    ref = rnn_forward_reference(states, params, n_layers=N_LAYERS,
                                hidden_size=HIDDEN, output_size=OUTPUT)
    assert out.shape == (SEQ, OUTPUT)
    assert jnp.allclose(out, ref, atol=1e-4, rtol=1e-4), "mismatch vs JAX reference"

    print("KERNEL_OK")
</pallas_src>

<mosaic_0001>
module attributes {stable_mosaic.version = 11 : i64} {
  func.func @_rnn_kernel(%arg0: memref<8x16xf32, #tpu.memory_space<vmem>>, %arg1: memref<16x32xf32, #tpu.memory_space<vmem>>, %arg2: memref<1x32x32xf32, #tpu.memory_space<vmem>>, %arg3: memref<2x32x32xf32, #tpu.memory_space<vmem>>, %arg4: memref<2x32xf32, #tpu.memory_space<vmem>>, %arg5: memref<32x8xf32, #tpu.memory_space<vmem>>, %arg6: memref<1x8xf32, #tpu.memory_space<vmem>>, %arg7: memref<8x8xf32, #tpu.memory_space<vmem>>, %arg8: memref<8x32xf32, #tpu.memory_space<vmem>>) attributes {dimension_semantics = [], scalar_prefetch = 0 : i64, scratch_operands = 1 : i64, tpu.core_type = #tpu.core_type<tc>} {
    %c0 = arith.constant 0 : index
    %c0_0 = arith.constant 0 : index
    %0 = vector.load %arg4[%c0, %c0_0] : memref<2x32xf32, #tpu.memory_space<vmem>>, vector<2x32xf32>
    %c0_1 = arith.constant 0 : index
    %c0_2 = arith.constant 0 : index
    %1 = vector.load %arg0[%c0_1, %c0_2] : memref<8x16xf32, #tpu.memory_space<vmem>>, vector<8x16xf32>
    %c0_3 = arith.constant 0 : index
    %c0_4 = arith.constant 0 : index
    %2 = vector.load %arg1[%c0_3, %c0_4] : memref<16x32xf32, #tpu.memory_space<vmem>>, vector<16x32xf32>
    %cst = arith.constant dense<0.000000e+00> : vector<8x32xf32>
    %3 = tpu.matmul %1, %2, %cst {dimension_numbers = #tpu.dot_dimension_numbers<[1], [0], [0], [1], [0, 0, 1, 1], [], []>} : vector<8x16xf32>, vector<16x32xf32>, vector<8x32xf32> -> vector<8x32xf32>
    %4 = vector.extract_strided_slice %0 {offsets = [0, 0], sizes = [1, 32], strides = [1, 1]} : vector<2x32xf32> to vector<1x32xf32>
    %5 = vector.broadcast %4 : vector<1x32xf32> to vector<8x32xf32>
    %6 = arith.addf %3, %5 : vector<8x32xf32>
    %cst_5 = arith.constant 0.000000e+00 : f32
    %7 = vector.broadcast %cst_5 : f32 to vector<1x32xf32>
    %cst_6 = arith.constant 0.000000e+00 : f32
    %8 = vector.broadcast %cst_6 : f32 to vector<1x32xf32>
    %9 = vector.extract_strided_slice %6 {offsets = [0, 0], sizes = [1, 32], strides = [1, 1]} : vector<8x32xf32> to vector<1x32xf32>
    %c0_7 = arith.constant 0 : index
    %c0_8 = arith.constant 0 : index
    %c0_9 = arith.constant 0 : index
    %10 = vector.load %arg3[%c0_7, %c0_8, %c0_9] : memref<2x32x32xf32, #tpu.memory_space<vmem>>, vector<1x32x32xf32>
    %11 = vector.shape_cast %10 : vector<1x32x32xf32> to vector<32x32xf32>
    %cst_10 = arith.constant dense<0.000000e+00> : vector<1x32xf32>
    %12 = tpu.matmul %7, %11, %cst_10 {dimension_numbers = #tpu.dot_dimension_numbers<[1], [0], [0], [1], [0, 0, 1, 1], [], []>} : vector<1x32xf32>, vector<32x32xf32>, vector<1x32xf32> -> vector<1x32xf32>
    %13 = arith.addf %9, %12 : vector<1x32xf32>
    %14 = math.tanh %13 : vector<1x32xf32>
    %c0_11 = arith.constant 0 : index
    %c0_12 = arith.constant 0 : index
    %c0_13 = arith.constant 0 : index
    %15 = vector.load %arg2[%c0_11, %c0_12, %c0_13] : memref<1x32x32xf32, #tpu.memory_space<vmem>>, vector<1x32x32xf32>
    %16 = vector.shape_cast %15 : vector<1x32x32xf32> to vector<32x32xf32>
    %cst_14 = arith.constant dense<0.000000e+00> : vector<1x32xf32>
    %17 = tpu.matmul %14, %16, %cst_14 {dimension_numbers = #tpu.dot_dimension_numbers<[1], [0], [0], [1], [0, 0, 1, 1], [], []>} : vector<1x32xf32>, vector<32x32xf32>, vector<1x32xf32> -> vector<1x32xf32>
    %c1 = arith.constant 1 : index
    %c0_15 = arith.constant 0 : index
    %c0_16 = arith.constant 0 : index
    %18 = vector.load %arg3[%c1, %c0_15, %c0_16] : memref<2x32x32xf32, #tpu.memory_space<vmem>>, vector<1x32x32xf32>
    %19 = vector.shape_cast %18 : vector<1x32x32xf32> to vector<32x32xf32>
    %cst_17 = arith.constant dense<0.000000e+00> : vector<1x32xf32>
    %20 = tpu.matmul %8, %19, %cst_17 {dimension_numbers = #tpu.dot_dimension_numbers<[1], [0], [0], [1], [0, 0, 1, 1], [], []>} : vector<1x32xf32>, vector<32x32xf32>, vector<1x32xf32> -> vector<1x32xf32>
    %21 = arith.addf %17, %20 : vector<1x32xf32>
    %22 = vector.extract_strided_slice %0 {offsets = [1, 0], sizes = [1, 32], strides = [1, 1]} : vector<2x32xf32> to vector<1x32xf32>
    %23 = arith.addf %21, %22 : vector<1x32xf32>
    %24 = math.tanh %23 : vector<1x32xf32>
    %c0_18 = arith.constant 0 : index
    %c0_19 = arith.constant 0 : index
    %25 = vector.load %arg8[%c0_18, %c0_19] : memref<8x32xf32, #tpu.memory_space<vmem>>, vector<1x32xf32>
    tpu.vector_store %arg8[%c0_18, %c0_19], %24 {strides = array<i32>} : memref<8x32xf32, #tpu.memory_space<vmem>>, vector<1x32xf32>,
    %26 = vector.extract_strided_slice %6 {offsets = [1, 0], sizes = [1, 32], strides = [1, 1]} : vector<8x32xf32> to vector<1x32xf32>
    %c0_20 = arith.constant 0 : index
    %c0_21 = arith.constant 0 : index
    %c0_22 = arith.constant 0 : index
    %27 = vector.load %arg3[%c0_20, %c0_21, %c0_22] : memref<2x32x32xf32, #tpu.memory_space<vmem>>, vector<1x32x32xf32>
    %28 = vector.shape_cast %27 : vector<1x32x32xf32> to vector<32x32xf32>
    %cst_23 = arith.constant dense<0.000000e+00> : vector<1x32xf32>
    %29 = tpu.matmul %14, %28, %cst_23 {dimension_numbers = #tpu.dot_dimension_numbers<[1], [0], [0], [1], [0, 0, 1, 1], [], []>} : vector<1x32xf32>, vector<32x32xf32>, vector<1x32xf32> -> vector<1x32xf32>
    %30 = arith.addf %26, %29 : vector<1x32xf32>
    %31 = math.tanh %30 : vector<1x32xf32>
    %c0_24 = arith.constant 0 : index
    %c0_25 = arith.constant 0 : index
    %c0_26 = arith.constant 0 : index
    %32 = vector.load %arg2[%c0_24, %c0_25, %c0_26] : memref<1x32x32xf32, #tpu.memory_space<vmem>>, vector<1x32x32xf32>
    %33 = vector.shape_cast %32 : vector<1x32x32xf32> to vector<32x32xf32>
    %cst_27 = arith.constant dense<0.000000e+00> : vector<1x32xf32>
    %34 = tpu.matmul %31, %33, %cst_27 {dimension_numbers = #tpu.dot_dimension_numbers<[1], [0], [0], [1], [0, 0, 1, 1], [], []>} : vector<1x32xf32>, vector<32x32xf32>, vector<1x32xf32> -> vector<1x32xf32>
    %c1_28 = arith.constant 1 : index
    %c0_29 = arith.constant 0 : index
    %c0_30 = arith.constant 0 : index
    %35 = vector.load %arg3[%c1_28, %c0_29, %c0_30] : memref<2x32x32xf32, #tpu.memory_space<vmem>>, vector<1x32x32xf32>
    %36 = vector.shape_cast %35 : vector<1x32x32xf32> to vector<32x32xf32>
    %cst_31 = arith.constant dense<0.000000e+00> : vector<1x32xf32>
    %37 = tpu.matmul %24, %36, %cst_31 {dimension_numbers = #tpu.dot_dimension_numbers<[1], [0], [0], [1], [0, 0, 1, 1], [], []>} : vector<1x32xf32>, vector<32x32xf32>, vector<1x32xf32> -> vector<1x32xf32>
    %38 = arith.addf %34, %37 : vector<1x32xf32>
    %39 = vector.extract_strided_slice %0 {offsets = [1, 0], sizes = [1, 32], strides = [1, 1]} : vector<2x32xf32> to vector<1x32xf32>
    %40 = arith.addf %38, %39 : vector<1x32xf32>
    %41 = math.tanh %40 : vector<1x32xf32>
    %c1_32 = arith.constant 1 : index
    %c0_33 = arith.constant 0 : index
    %42 = vector.load %arg8[%c1_32, %c0_33] : memref<8x32xf32, #tpu.memory_space<vmem>>, vector<1x32xf32>
    tpu.vector_store %arg8[%c1_32, %c0_33], %41 {strides = array<i32>} : memref<8x32xf32, #tpu.memory_space<vmem>>, vector<1x32xf32>,
    %43 = vector.extract_strided_slice %6 {offsets = [2, 0], sizes = [1, 32], strides = [1, 1]} : vector<8x32xf32> to vector<1x32xf32>
    %c0_34 = arith.constant 0 : index
    %c0_35 = arith.constant 0 : index
    %c0_36 = arith.constant 0 : index
    %44 = vector.load %arg3[%c0_34, %c0_35, %c0_36] : memref<2x32x32xf32, #tpu.memory_space<vmem>>, vector<1x32x32xf32>
    %45 = vector.shape_cast %44 : vector<1x32x32xf32> to vector<32x32xf32>
    %cst_37 = arith.constant dense<0.000000e+00> : vector<1x32xf32>
    %46 = tpu.matmul %31, %45, %cst_37 {dimension_numbers = #tpu.dot_dimension_numbers<[1], [0], [0], [1], [0, 0, 1, 1], [], []>} : vector<1x32xf32>, vector<32x32xf32>, vector<1x32xf32> -> vector<1x32xf32>
    %47 = arith.addf %43, %46 : vector<1x32xf32>
    %48 = math.tanh %47 : vector<1x32xf32>
    %c0_38 = arith.constant 0 : index
    %c0_39 = arith.constant 0 : index
    %c0_40 = arith.constant 0 : index
    %49 = vector.load %arg2[%c0_38, %c0_39, %c0_40] : memref<1x32x32xf32, #tpu.memory_space<vmem>>, vector<1x32x32xf32>
    %50 = vector.shape_cast %49 : vector<1x32x32xf32> to vector<32x32xf32>
    %cst_41 = arith.constant dense<0.000000e+00> : vector<1x32xf32>
    %51 = tpu.matmul %48, %50, %cst_41 {dimension_numbers = #tpu.dot_dimension_numbers<[1], [0], [0], [1], [0, 0, 1, 1], [], []>} : vector<1x32xf32>, vector<32x32xf32>, vector<1x32xf32> -> vector<1x32xf32>
    %c1_42 = arith.constant 1 : index
    %c0_43 = arith.constant 0 : index
    %c0_44 = arith.constant 0 : index
    %52 = vector.load %arg3[%c1_42, %c0_43, %c0_44] : memref<2x32x32xf32, #tpu.memory_space<vmem>>, vector<1x32x32xf32>
    %53 = vector.shape_cast %52 : vector<1x32x32xf32> to vector<32x32xf32>
    %cst_45 = arith.constant dense<0.000000e+00> : vector<1x32xf32>
    %54 = tpu.matmul %41, %53, %cst_45 {dimension_numbers = #tpu.dot_dimension_numbers<[1], [0], [0], [1], [0, 0, 1, 1], [], []>} : vector<1x32xf32>, vector<32x32xf32>, vector<1x32xf32> -> vector<1x32xf32>
    %55 = arith.addf %51, %54 : vector<1x32xf32>
    %56 = vector.extract_strided_slice %0 {offsets = [1, 0], sizes = [1, 32], strides = [1, 1]} : vector<2x32xf32> to vector<1x32xf32>
    %57 = arith.addf %55, %56 : vector<1x32xf32>
    %58 = math.tanh %57 : vector<1x32xf32>
    %c2 = arith.constant 2 : index
    %c0_46 = arith.constant 0 : index
    %59 = vector.load %arg8[%c2, %c0_46] : memref<8x32xf32, #tpu.memory_space<vmem>>, vector<1x32xf32>
    tpu.vector_store %arg8[%c2, %c0_46], %58 {strides = array<i32>} : memref<8x32xf32, #tpu.memory_space<vmem>>, vector<1x32xf32>,
    %60 = vector.extract_strided_slice %6 {offsets = [3, 0], sizes = [1, 32], strides = [1, 1]} : vector<8x32xf32> to vector<1x32xf32>
    %c0_47 = arith.constant 0 : index
    %c0_48 = arith.constant 0 : index
    %c0_49 = arith.constant 0 : index
    %61 = vector.load %arg3[%c0_47, %c0_48, %c0_49] : memref<2x32x32xf32, #tpu.memory_space<vmem>>, vector<1x32x32xf32>
    %62 = vector.shape_cast %61 : vector<1x32x32xf32> to vector<32x32xf32>
    %cst_50 = arith.constant dense<0.000000e+00> : vector<1x32xf32>
    %63 = tpu.matmul %48, %62, %cst_50 {dimension_numbers = #tpu.dot_dimension_numbers<[1], [0], [0], [1], [0, 0, 1, 1], [], []>} : vector<1x32xf32>, vector<32x32xf32>, vector<1x32xf32> -> vector<1x32xf32>
    %64 = arith.addf %60, %63 : vector<1x32xf32>
    %65 = math.tanh %64 : vector<1x32xf32>
    %c0_51 = arith.constant 0 : index
    %c0_52 = arith.constant 0 : index
    %c0_53 = arith.constant 0 : index
    %66 = vector.load %arg2[%c0_51, %c0_52, %c0_53] : memref<1x32x32xf32, #tpu.memory_space<vmem>>, vector<1x32x32xf32>
    %67 = vector.shape_cast %66 : vector<1x32x32xf32> to vector<32x32xf32>
    %cst_54 = arith.constant dense<0.000000e+00> : vector<1x32xf32>
    %68 = tpu.matmul %65, %67, %cst_54 {dimension_numbers = #tpu.dot_dimension_numbers<[1], [0], [0], [1], [0, 0, 1, 1], [], []>} : vector<1x32xf32>, vector<32x32xf32>, vector<1x32xf32> -> vector<1x32xf32>
    %c1_55 = arith.constant 1 : index
    %c0_56 = arith.constant 0 : index
    %c0_57 = arith.constant 0 : index
    %69 = vector.load %arg3[%c1_55, %c0_56, %c0_57] : memref<2x32x32xf32, #tpu.memory_space<vmem>>, vector<1x32x32xf32>
    %70 = vector.shape_cast %69 : vector<1x32x32xf32> to vector<32x32xf32>
    %cst_58 = arith.constant dense<0.000000e+00> : vector<1x32xf32>
    %71 = tpu.matmul %58, %70, %cst_58 {dimension_numbers = #tpu.dot_dimension_numbers<[1], [0], [0], [1], [0, 0, 1, 1], [], []>} : vector<1x32xf32>, vector<32x32xf32>, vector<1x32xf32> -> vector<1x32xf32>
    %72 = arith.addf %68, %71 : vector<1x32xf32>
    %73 = vector.extract_strided_slice %0 {offsets = [1, 0], sizes = [1, 32], strides = [1, 1]} : vector<2x32xf32> to vector<1x32xf32>
    %74 = arith.addf %72, %73 : vector<1x32xf32>
    %75 = math.tanh %74 : vector<1x32xf32>
    %c3 = arith.constant 3 : index
    %c0_59 = arith.constant 0 : index
    %76 = vector.load %arg8[%c3, %c0_59] : memref<8x32xf32, #tpu.memory_space<vmem>>, vector<1x32xf32>
    tpu.vector_store %arg8[%c3, %c0_59], %75 {strides = array<i32>} : memref<8x32xf32, #tpu.memory_space<vmem>>, vector<1x32xf32>,
    %77 = vector.extract_strided_slice %6 {offsets = [4, 0], sizes = [1, 32], strides = [1, 1]} : vector<8x32xf32> to vector<1x32xf32>
    %c0_60 = arith.constant 0 : index
    %c0_61 = arith.constant 0 : index
    %c0_62 = arith.constant 0 : index
    %78 = vector.load %arg3[%c0_60, %c0_61, %c0_62] : memref<2x32x32xf32, #tpu.memory_space<vmem>>, vector<1x32x32xf32>
    %79 = vector.shape_cast %78 : vector<1x32x32xf32> to vector<32x32xf32>
    %cst_63 = arith.constant dense<0.000000e+00> : vector<1x32xf32>
    %80 = tpu.matmul %65, %79, %cst_63 {dimension_numbers = #tpu.dot_dimension_numbers<[1], [0], [0], [1], [0, 0, 1, 1], [], []>} : vector<1x32xf32>, vector<32x32xf32>, vector<1x32xf32> -> vector<1x32xf32>
    %81 = arith.addf %77, %80 : vector<1x32xf32>
    %82 = math.tanh %81 : vector<1x32xf32>
    %c0_64 = arith.constant 0 : index
    %c0_65 = arith.constant 0 : index
    %c0_66 = arith.constant 0 : index
    %83 = vector.load %arg2[%c0_64, %c0_65, %c0_66] : memref<1x32x32xf32, #tpu.memory_space<vmem>>, vector<1x32x32xf32>
    %84 = vector.shape_cast %83 : vector<1x32x32xf32> to vector<32x32xf32>
    %cst_67 = arith.constant dense<0.000000e+00> : vector<1x32xf32>
    %85 = tpu.matmul %82, %84, %cst_67 {dimension_numbers = #tpu.dot_dimension_numbers<[1], [0], [0], [1], [0, 0, 1, 1], [], []>} : vector<1x32xf32>, vector<32x32xf32>, vector<1x32xf32> -> vector<1x32xf32>
    %c1_68 = arith.constant 1 : index
    %c0_69 = arith.constant 0 : index
    %c0_70 = arith.constant 0 : index
    %86 = vector.load %arg3[%c1_68, %c0_69, %c0_70] : memref<2x32x32xf32, #tpu.memory_space<vmem>>, vector<1x32x32xf32>
    %87 = vector.shape_cast %86 : vector<1x32x32xf32> to vector<32x32xf32>
    %cst_71 = arith.constant dense<0.000000e+00> : vector<1x32xf32>
    %88 = tpu.matmul %75, %87, %cst_71 {dimension_numbers = #tpu.dot_dimension_numbers<[1], [0], [0], [1], [0, 0, 1, 1], [], []>} : vector<1x32xf32>, vector<32x32xf32>, vector<1x32xf32> -> vector<1x32xf32>
    %89 = arith.addf %85, %88 : vector<1x32xf32>
    %90 = vector.extract_strided_slice %0 {offsets = [1, 0], sizes = [1, 32], strides = [1, 1]} : vector<2x32xf32> to vector<1x32xf32>
    %91 = arith.addf %89, %90 : vector<1x32xf32>
    %92 = math.tanh %91 : vector<1x32xf32>
    %c4 = arith.constant 4 : index
    %c0_72 = arith.constant 0 : index
    %93 = vector.load %arg8[%c4, %c0_72] : memref<8x32xf32, #tpu.memory_space<vmem>>, vector<1x32xf32>
    tpu.vector_store %arg8[%c4, %c0_72], %92 {strides = array<i32>} : memref<8x32xf32, #tpu.memory_space<vmem>>, vector<1x32xf32>,
    %94 = vector.extract_strided_slice %6 {offsets = [5, 0], sizes = [1, 32], strides = [1, 1]} : vector<8x32xf32> to vector<1x32xf32>
    %c0_73 = arith.constant 0 : index
    %c0_74 = arith.constant 0 : index
    %c0_75 = arith.constant 0 : index
    %95 = vector.load %arg3[%c0_73, %c0_74, %c0_75] : memref<2x32x32xf32, #tpu.memory_space<vmem>>, vector<1x32x32xf32>
    %96 = vector.shape_cast %95 : vector<1x32x32xf32> to vector<32x32xf32>
    %cst_76 = arith.constant dense<0.000000e+00> : vector<1x32xf32>
    %97 = tpu.matmul %82, %96, %cst_76 {dimension_numbers = #tpu.dot_dimension_numbers<[1], [0], [0], [1], [0, 0, 1, 1], [], []>} : vector<1x32xf32>, vector<32x32xf32>, vector<1x32xf32> -> vector<1x32xf32>
    %98 = arith.addf %94, %97 : vector<1x32xf32>
    %99 = math.tanh %98 : vector<1x32xf32>
    %c0_77 = arith.constant 0 : index
    %c0_78 = arith.constant 0 : index
    %c0_79 = arith.constant 0 : index
    %100 = vector.load %arg2[%c0_77, %c0_78, %c0_79] : memref<1x32x32xf32, #tpu.memory_space<vmem>>, vector<1x32x32xf32>
    %101 = vector.shape_cast %100 : vector<1x32x32xf32> to vector<32x32xf32>
    %cst_80 = arith.constant dense<0.000000e+00> : vector<1x32xf32>
    %102 = tpu.matmul %99, %101, %cst_80 {dimension_numbers = #tpu.dot_dimension_numbers<[1], [0], [0], [1], [0, 0, 1, 1], [], []>} : vector<1x32xf32>, vector<32x32xf32>, vector<1x32xf32> -> vector<1x32xf32>
    %c1_81 = arith.constant 1 : index
    %c0_82 = arith.constant 0 : index
    %c0_83 = arith.constant 0 : index
    %103 = vector.load %arg3[%c1_81, %c0_82, %c0_83] : memref<2x32x32xf32, #tpu.memory_space<vmem>>, vector<1x32x32xf32>
    %104 = vector.shape_cast %103 : vector<1x32x32xf32> to vector<32x32xf32>
    %cst_84 = arith.constant dense<0.000000e+00> : vector<1x32xf32>
    %105 = tpu.matmul %92, %104, %cst_84 {dimension_numbers = #tpu.dot_dimension_numbers<[1], [0], [0], [1], [0, 0, 1, 1], [], []>} : vector<1x32xf32>, vector<32x32xf32>, vector<1x32xf32> -> vector<1x32xf32>
    %106 = arith.addf %102, %105 : vector<1x32xf32>
    %107 = vector.extract_strided_slice %0 {offsets = [1, 0], sizes = [1, 32], strides = [1, 1]} : vector<2x32xf32> to vector<1x32xf32>
    %108 = arith.addf %106, %107 : vector<1x32xf32>
    %109 = math.tanh %108 : vector<1x32xf32>
    %c5 = arith.constant 5 : index
    %c0_85 = arith.constant 0 : index
    %110 = vector.load %arg8[%c5, %c0_85] : memref<8x32xf32, #tpu.memory_space<vmem>>, vector<1x32xf32>
    tpu.vector_store %arg8[%c5, %c0_85], %109 {strides = array<i32>} : memref<8x32xf32, #tpu.memory_space<vmem>>, vector<1x32xf32>,
    %111 = vector.extract_strided_slice %6 {offsets = [6, 0], sizes = [1, 32], strides = [1, 1]} : vector<8x32xf32> to vector<1x32xf32>
    %c0_86 = arith.constant 0 : index
    %c0_87 = arith.constant 0 : index
    %c0_88 = arith.constant 0 : index
    %112 = vector.load %arg3[%c0_86, %c0_87, %c0_88] : memref<2x32x32xf32, #tpu.memory_space<vmem>>, vector<1x32x32xf32>
    %113 = vector.shape_cast %112 : vector<1x32x32xf32> to vector<32x32xf32>
    %cst_89 = arith.constant dense<0.000000e+00> : vector<1x32xf32>
    %114 = tpu.matmul %99, %113, %cst_89 {dimension_numbers = #tpu.dot_dimension_numbers<[1], [0], [0], [1], [0, 0, 1, 1], [], []>} : vector<1x32xf32>, vector<32x32xf32>, vector<1x32xf32> -> vector<1x32xf32>
    %115 = arith.addf %111, %114 : vector<1x32xf32>
    %116 = math.tanh %115 : vector<1x32xf32>
    %c0_90 = arith.constant 0 : index
    %c0_91 = arith.constant 0 : index
    %c0_92 = arith.constant 0 : index
    %117 = vector.load %arg2[%c0_90, %c0_91, %c0_92] : memref<1x32x32xf32, #tpu.memory_space<vmem>>, vector<1x32x32xf32>
    %118 = vector.shape_cast %117 : vector<1x32x32xf32> to vector<32x32xf32>
    %cst_93 = arith.constant dense<0.000000e+00> : vector<1x32xf32>
    %119 = tpu.matmul %116, %118, %cst_93 {dimension_numbers = #tpu.dot_dimension_numbers<[1], [0], [0], [1], [0, 0, 1, 1], [], []>} : vector<1x32xf32>, vector<32x32xf32>, vector<1x32xf32> -> vector<1x32xf32>
    %c1_94 = arith.constant 1 : index
    %c0_95 = arith.constant 0 : index
    %c0_96 = arith.constant 0 : index
    %120 = vector.load %arg3[%c1_94, %c0_95, %c0_96] : memref<2x32x32xf32, #tpu.memory_space<vmem>>, vector<1x32x32xf32>
    %121 = vector.shape_cast %120 : vector<1x32x32xf32> to vector<32x32xf32>
    %cst_97 = arith.constant dense<0.000000e+00> : vector<1x32xf32>
    %122 = tpu.matmul %109, %121, %cst_97 {dimension_numbers = #tpu.dot_dimension_numbers<[1], [0], [0], [1], [0, 0, 1, 1], [], []>} : vector<1x32xf32>, vector<32x32xf32>, vector<1x32xf32> -> vector<1x32xf32>
    %123 = arith.addf %119, %122 : vector<1x32xf32>
    %124 = vector.extract_strided_slice %0 {offsets = [1, 0], sizes = [1, 32], strides = [1, 1]} : vector<2x32xf32> to vector<1x32xf32>
    %125 = arith.addf %123, %124 : vector<1x32xf32>
    %126 = math.tanh %125 : vector<1x32xf32>
    %c6 = arith.constant 6 : index
    %c0_98 = arith.constant 0 : index
    %127 = vector.load %arg8[%c6, %c0_98] : memref<8x32xf32, #tpu.memory_space<vmem>>, vector<1x32xf32>
    tpu.vector_store %arg8[%c6, %c0_98], %126 {strides = array<i32>} : memref<8x32xf32, #tpu.memory_space<vmem>>, vector<1x32xf32>,
    %128 = vector.extract_strided_slice %6 {offsets = [7, 0], sizes = [1, 32], strides = [1, 1]} : vector<8x32xf32> to vector<1x32xf32>
    %c0_99 = arith.constant 0 : index
    %c0_100 = arith.constant 0 : index
    %c0_101 = arith.constant 0 : index
    %129 = vector.load %arg3[%c0_99, %c0_100, %c0_101] : memref<2x32x32xf32, #tpu.memory_space<vmem>>, vector<1x32x32xf32>
    %130 = vector.shape_cast %129 : vector<1x32x32xf32> to vector<32x32xf32>
    %cst_102 = arith.constant dense<0.000000e+00> : vector<1x32xf32>
    %131 = tpu.matmul %116, %130, %cst_102 {dimension_numbers = #tpu.dot_dimension_numbers<[1], [0], [0], [1], [0, 0, 1, 1], [], []>} : vector<1x32xf32>, vector<32x32xf32>, vector<1x32xf32> -> vector<1x32xf32>
    %132 = arith.addf %128, %131 : vector<1x32xf32>
    %133 = math.tanh %132 : vector<1x32xf32>
    %c0_103 = arith.constant 0 : index
    %c0_104 = arith.constant 0 : index
    %c0_105 = arith.constant 0 : index
    %134 = vector.load %arg2[%c0_103, %c0_104, %c0_105] : memref<1x32x32xf32, #tpu.memory_space<vmem>>, vector<1x32x32xf32>
    %135 = vector.shape_cast %134 : vector<1x32x32xf32> to vector<32x32xf32>
    %cst_106 = arith.constant dense<0.000000e+00> : vector<1x32xf32>
    %136 = tpu.matmul %133, %135, %cst_106 {dimension_numbers = #tpu.dot_dimension_numbers<[1], [0], [0], [1], [0, 0, 1, 1], [], []>} : vector<1x32xf32>, vector<32x32xf32>, vector<1x32xf32> -> vector<1x32xf32>
    %c1_107 = arith.constant 1 : index
    %c0_108 = arith.constant 0 : index
    %c0_109 = arith.constant 0 : index
    %137 = vector.load %arg3[%c1_107, %c0_108, %c0_109] : memref<2x32x32xf32, #tpu.memory_space<vmem>>, vector<1x32x32xf32>
    %138 = vector.shape_cast %137 : vector<1x32x32xf32> to vector<32x32xf32>
    %cst_110 = arith.constant dense<0.000000e+00> : vector<1x32xf32>
    %139 = tpu.matmul %126, %138, %cst_110 {dimension_numbers = #tpu.dot_dimension_numbers<[1], [0], [0], [1], [0, 0, 1, 1], [], []>} : vector<1x32xf32>, vector<32x32xf32>, vector<1x32xf32> -> vector<1x32xf32>
    %140 = arith.addf %136, %139 : vector<1x32xf32>
    %141 = vector.extract_strided_slice %0 {offsets = [1, 0], sizes = [1, 32], strides = [1, 1]} : vector<2x32xf32> to vector<1x32xf32>
    %142 = arith.addf %140, %141 : vector<1x32xf32>
    %143 = math.tanh %142 : vector<1x32xf32>
    %c7 = arith.constant 7 : index
    %c0_111 = arith.constant 0 : index
    %144 = vector.load %arg8[%c7, %c0_111] : memref<8x32xf32, #tpu.memory_space<vmem>>, vector<1x32xf32>
    tpu.vector_store %arg8[%c7, %c0_111], %143 {strides = array<i32>} : memref<8x32xf32, #tpu.memory_space<vmem>>, vector<1x32xf32>,
    %c0_112 = arith.constant 0 : index
    %c0_113 = arith.constant 0 : index
    %145 = vector.load %arg8[%c0_112, %c0_113] : memref<8x32xf32, #tpu.memory_space<vmem>>, vector<8x32xf32>
    %c0_114 = arith.constant 0 : index
    %c0_115 = arith.constant 0 : index
    %146 = vector.load %arg5[%c0_114, %c0_115] : memref<32x8xf32, #tpu.memory_space<vmem>>, vector<32x8xf32>
    %cst_116 = arith.constant dense<0.000000e+00> : vector<8x8xf32>
    %147 = tpu.matmul %145, %146, %cst_116 {dimension_numbers = #tpu.dot_dimension_numbers<[1], [0], [0], [1], [0, 0, 1, 1], [], []>} : vector<8x32xf32>, vector<32x8xf32>, vector<8x8xf32> -> vector<8x8xf32>
    %c0_117 = arith.constant 0 : index
    %c0_118 = arith.constant 0 : index
    %148 = vector.load %arg6[%c0_117, %c0_118] : memref<1x8xf32, #tpu.memory_space<vmem>>, vector<1x8xf32>
    %149 = vector.broadcast %148 : vector<1x8xf32> to vector<8x8xf32>
    %150 = arith.addf %147, %149 : vector<8x8xf32>
    %151 = math.tanh %150 : vector<8x8xf32>
    %c0_119 = arith.constant 0 : index
    %c0_120 = arith.constant 0 : index
    %152 = vector.load %arg7[%c0_119, %c0_120] : memref<8x8xf32, #tpu.memory_space<vmem>>, vector<8x8xf32>
    tpu.vector_store %arg7[%c0_119, %c0_120], %151 {strides = array<i32>} : memref<8x8xf32, #tpu.memory_space<vmem>>, vector<8x8xf32>,
    return
  }
}

</mosaic_0001>

<llo_original>
// kernel: tpu_custom_call.1
$region0: #{tpu_custom_call.1}
  #allocation0 [shape = 'u32[]', space=smem, size = 0x4, offset = 0x4, fixed_abs, tag = 'smem constant byte address 0x4 - core index']
  #allocation1 [shape = 'u32[144,128]{1,0:T(1,128)}', space=vmem, size = 0x12000, scoped, tag = 'internal scratch']
  #allocation2 [shape = 'f32[8,32]{1,0:T(8,128)}', space=vmem, size = 0x1000, scoped, tag = 'scratch operand']
  %s0 = inlined_call_operand.vmem [shape: f32[8,16], index: 0, kind: input, shape index: {}]
  %s1 = inlined_call_operand.hbm [shape: f32[16,32], index: 1, kind: input, shape index: {}]
  %s2 = inlined_call_operand.vmem [shape: f32[1,32,32], index: 2, kind: input, shape index: {}]
  %s3 = inlined_call_operand.hbm [shape: f32[2,32,32], index: 3, kind: input, shape index: {}]
  %s4 = inlined_call_operand.hbm [shape: f32[2,32], index: 4, kind: input, shape index: {}]
  %s5 = inlined_call_operand.vmem [shape: f32[32,8], index: 5, kind: input, shape index: {}]
  %s6 = inlined_call_operand.vmem [shape: f32[1,8], index: 6, kind: input, shape index: {}]
  %s7 = inlined_call_operand.hbm [shape: f32[8,8], index: 7, kind: output, shape index: {}]
  %s8 = sld [smem:[#allocation0]]
  $region50: #{tpu_custom_call.1} parent=0
    _
  %s10 = ssub.s32 1, %s8
  %s11 = scalar_select 0, %s10, %s8
  $region1: #{tpu_custom_call.1} parent=0
    #allocation3 [shape = 'u8[8192]{0}', space=vmem, size = 0x2000, scoped, tag = 'input window, operand 1, single buffered']
    #allocation4 [shape = 's32[1]{0}', space=sflag, size = 0x4, scoped, tag = 'scoped memory for tpu_custom_call.1']
    #allocation5 [shape = 's32[1]{0}', space=sflag, size = 0x4, scoped, tag = 'scoped memory for tpu_custom_call.1']
    #allocation6 [shape = 'u8[32768]{0}', space=vmem, size = 0x8000, scoped, tag = 'input window, operand 3, single buffered']
    #allocation7 [shape = 's32[1]{0}', space=sflag, size = 0x4, scoped, tag = 'scoped memory for tpu_custom_call.1']
    #allocation8 [shape = 'u8[1024]{0}', space=vmem, size = 0x400, scoped, tag = 'input window, operand 4, single buffered']
    #allocation9 [shape = 'u8[4096]{0}', space=vmem, size = 0x1000, scoped, tag = 'output window, operand 0, single buffered']
    %12 = vsyncpa [#allocation4], 0
    %13 = vsyncpa [#allocation7], 0
    %14 = vsyncpa [#allocation5], 0
    // Predicated region
    $region2: #{tpu_custom_call.1} parent=1 // pred_check
      _
    $region3: #{tpu_custom_call.1} parent=1 // pred_check_branch
      %16 = sbr.rel (0) target = $region5
    $region4: #{tpu_custom_call.1} parent=1 // pred_region
      _
    $region5: #{tpu_custom_call.1} parent=1 // pred_fallthru
      _
    // Predicated region
    $region6: #{tpu_custom_call.1} parent=1 // pred_check
      _
    $region7: #{tpu_custom_call.1} parent=1 // pred_check_branch
      %18 = sbr.rel (0) target = $region9
    $region8: #{tpu_custom_call.1} parent=1 // pred_region
      %s20 = ssub.s32 256, 256
      %21 = vsyncadd [#allocation4], %s20
      %s22 = sshll.u32 [#allocation3], 4
      %s23 = int_to_ptr.vmem [resolvable:$true] %s22
      %28 = dma.hbm_to_vmem [thread:$0]  %s1, 256, %s23, [#allocation4], 128, 128, 8
    $region9: #{tpu_custom_call.1} parent=1 // pred_fallthru
      _
    // Predicated region
    $region10: #{tpu_custom_call.1} parent=1 // pred_check
      _
    $region11: #{tpu_custom_call.1} parent=1 // pred_check_branch
      %30 = sbr.rel (0) target = $region13
    $region12: #{tpu_custom_call.1} parent=1 // pred_region
      _
    $region13: #{tpu_custom_call.1} parent=1 // pred_fallthru
      _
    // Predicated region
    $region14: #{tpu_custom_call.1} parent=1 // pred_check
      _
    $region15: #{tpu_custom_call.1} parent=1 // pred_check_branch
      %32 = sbr.rel (0) target = $region17
    $region16: #{tpu_custom_call.1} parent=1 // pred_region
      %s34 = ssub.s32 1024, 1024
      %35 = vsyncadd [#allocation7], %s34
      %s36 = sshll.u32 [#allocation6], 4
      %s37 = int_to_ptr.vmem [resolvable:$true] %s36
      %42 = dma.hbm_to_vmem [thread:$0]  %s3, 1024, %s37, [#allocation7], 128, 128, 8
    $region17: #{tpu_custom_call.1} parent=1 // pred_fallthru
      _
    // Predicated region
    $region18: #{tpu_custom_call.1} parent=1 // pred_check
      _
    $region19: #{tpu_custom_call.1} parent=1 // pred_check_branch
      %44 = sbr.rel (0) target = $region21
    $region20: #{tpu_custom_call.1} parent=1 // pred_region
      %s46 = ssub.s32 32, 32
      %47 = vsyncadd [#allocation7], %s46
      %s49 = sshll.u32 [#allocation8], 4
      %s50 = int_to_ptr.vmem [resolvable:$true] %s49
      %52 = dma.hbm_to_vmem [thread:$0]  %s4, 32, %s50, [#allocation7]
    $region21: #{tpu_custom_call.1} parent=1 // pred_fallthru
      _
    // Predicated region
    $region22: #{tpu_custom_call.1} parent=1 // pred_check
      _
    $region23: #{tpu_custom_call.1} parent=1 // pred_check_branch
      %54 = sbr.rel (0) target = $region25
    $region24: #{tpu_custom_call.1} parent=1 // pred_region
      _
    $region25: #{tpu_custom_call.1} parent=1 // pred_fallthru
      _
    // Predicated region
    $region26: #{tpu_custom_call.1} parent=1 // pred_check
      _
    $region27: #{tpu_custom_call.1} parent=1 // pred_check_branch
      %56 = sbr.rel (0) target = $region29
    $region28: #{tpu_custom_call.1} parent=1 // pred_region
      _
    $region29: #{tpu_custom_call.1} parent=1 // pred_fallthru
      _
    // Predicated region
    $region30: #{tpu_custom_call.1} parent=1 // pred_check
      _
    $region31: #{tpu_custom_call.1} parent=1 // pred_check_branch
      %58 = sbr.rel (0) target = $region33
    $region32: #{tpu_custom_call.1} parent=1 // pred_region
      %59 = dma.done [#allocation4], 256
    $region33: #{tpu_custom_call.1} parent=1 // pred_fallthru
      _
    // Predicated region
    $region34: #{tpu_custom_call.1} parent=1 // pred_check
      _
    $region35: #{tpu_custom_call.1} parent=1 // pred_check_branch
      %61 = sbr.rel (0) target = $region37
    $region36: #{tpu_custom_call.1} parent=1 // pred_region
      %62 = dma.done [#allocation7], 1024
    $region37: #{tpu_custom_call.1} parent=1 // pred_fallthru
      _
    // Predicated region
    $region38: #{tpu_custom_call.1} parent=1 // pred_check
      _
    $region39: #{tpu_custom_call.1} parent=1 // pred_check_branch
      %64 = sbr.rel (0) target = $region41
    $region40: #{tpu_custom_call.1} parent=1 // pred_region
      %65 = dma.done [#allocation7], 32
    $region41: #{tpu_custom_call.1} parent=1 // pred_fallthru
      _
    %v66 = vld [vmem:[#allocation8] sm:$0x3]
    %v67 = vld [vmem:[%s0] sm:$0xff]
    %v68 = vld [vmem:[#allocation3] sm:$0xff]
    %v69 = vld [vmem:[#allocation3 + $0x8] sm:$0xff]
    %v70 = vlaneseq
    %v71 = vshrl.u32 %v70, 7
    %v72 = vsub.s32 0, %v71
    %v73 = vrot.slane %v66, %v72
    %vm74 = vcmask 130048
    %v76 = vsel %vm74, %v67, 0
    %78 = vmatprep.subr.mxu0 0.0
    %79 = vmatpush1.msra.mxu0 0.0
    %80 = vmatprep.subr.mxu0 0.0
    %81 = vmatpush1.msra.mxu0 0.0
    %82 = vmatprep.subr.mxu0 0.0
    %83 = vmatpush1.msra.mxu0 0.0
    %84 = vmatprep.subr.mxu0 0.0
    %85 = vmatpush1.msra.mxu0 0.0
    %86 = vmatprep.subr.mxu0 0.0
    %87 = vmatpush1.msra.mxu0 0.0
    %88 = vmatprep.subr.mxu0 0.0
    %89 = vmatpush1.msra.mxu0 0.0
    %90 = vmatprep.subr.mxu0 0.0
    %91 = vmatpush1.msra.mxu0 0.0
    %92 = vmatprep.subr.mxu0 0.0
    %93 = vmatpush1.msra.mxu0 0.0
    %94 = vmatprep.subr.mxu0 0.0
    %95 = vmatpush1.msra.mxu0 0.0
    %96 = vmatprep.subr.mxu0 0.0
    %97 = vmatpush1.msra.mxu0 0.0
    %98 = vmatprep.subr.mxu0 0.0
    %99 = vmatpush1.msra.mxu0 0.0
    %100 = vmatprep.subr.mxu0 0.0
    %101 = vmatpush1.msra.mxu0 0.0
    %102 = vmatprep.subr.mxu0 0.0
    %103 = vmatpush1.msra.mxu0 0.0
    %104 = vmatprep.subr.mxu0 0.0
    %105 = vmatpush1.msra.mxu0 0.0
    %106 = vmatprep.subr.mxu0 0.0
    %107 = vmatpush1.msra.mxu0 %v69
    %108 = vmatprep.subr.mxu0 0.0
    %109 = vmatpush1.msra.mxu0 %v68
    %110 = vmatprep.subr.mxu0 0.0
    %111 = vmatpush2.msra.mxu0 0.0
    %112 = vmatprep.subr.mxu0 0.0
    %113 = vmatpush2.msra.mxu0 0.0
    %114 = vmatprep.subr.mxu0 0.0
    %115 = vmatpush2.msra.mxu0 0.0
    %116 = vmatprep.subr.mxu0 0.0
    %117 = vmatpush2.msra.mxu0 0.0
    %118 = vmatprep.subr.mxu0 0.0
    %119 = vmatpush2.msra.mxu0 0.0
    %120 = vmatprep.subr.mxu0 0.0
    %121 = vmatpush2.msra.mxu0 0.0
    %122 = vmatprep.subr.mxu0 0.0
    %123 = vmatpush2.msra.mxu0 0.0
    %124 = vmatprep.subr.mxu0 0.0
    %125 = vmatpush2.msra.mxu0 0.0
    %126 = vmatprep.subr.mxu0 0.0
    %127 = vmatpush2.msra.mxu0 0.0
    %128 = vmatprep.subr.mxu0 0.0
    %129 = vmatpush2.msra.mxu0 0.0
    %130 = vmatprep.subr.mxu0 0.0
    %131 = vmatpush2.msra.mxu0 0.0
    %132 = vmatprep.subr.mxu0 0.0
    %133 = vmatpush2.msra.mxu0 0.0
    %134 = vmatprep.subr.mxu0 0.0
    %135 = vmatpush2.msra.mxu0 0.0
    %136 = vmatprep.subr.mxu0 0.0
    %137 = vmatpush2.msra.mxu0 0.0
    %138 = vmatprep.subr.mxu0 0.0
    %139 = vmatpush2.msra.mxu0 0.0
    %140 = vmatprep.subr.mxu0 0.0
    %141 = vmatpush2.msra.mxu0 0.0
    %142 = vmatprep.mubr.f32.mxu0 0.0
    %143 = vmatmul.mubr.f32.gmra.mxu0 %v76
    %v144 = vpop.f32.mrf.mxu0
    %v145 = vadd.f32 %v73, %v144
    %v146 = vpop.f32.mrf.mxu0
    %147 = vdwg.mxu0
    %v148 = vld [vmem:[#allocation6] sm:$0xff]
    %v149 = vld [vmem:[#allocation6 + $0x8] sm:$0xff]
    %v150 = vld [vmem:[#allocation6 + $0x10] sm:$0xff]
    %v151 = vld [vmem:[#allocation6 + $0x18] sm:$0xff]
    %vm152 = vcmask 261120
    %v154 = vsel %vm152, 0.0, 0
    %156 = vmatprep.subr.mxu0 0.0
    %157 = vmatpush1.msra.mxu0 0.0
    %158 = vmatprep.subr.mxu0 0.0
    %159 = vmatpush1.msra.mxu0 0.0
    %160 = vmatprep.subr.mxu0 0.0
    %161 = vmatpush1.msra.mxu0 0.0
    %162 = vmatprep.subr.mxu0 0.0
    %163 = vmatpush1.msra.mxu0 0.0
    %164 = vmatprep.subr.mxu0 0.0
    %165 = vmatpush1.msra.mxu0 0.0
    %166 = vmatprep.subr.mxu0 0.0
    %167 = vmatpush1.msra.mxu0 0.0
    %168 = vmatprep.subr.mxu0 0.0
    %169 = vmatpush1.msra.mxu0 0.0
    %170 = vmatprep.subr.mxu0 0.0
    %171 = vmatpush1.msra.mxu0 0.0
    %172 = vmatprep.subr.mxu0 0.0
    %173 = vmatpush1.msra.mxu0 0.0
    %174 = vmatprep.subr.mxu0 0.0
    %175 = vmatpush1.msra.mxu0 0.0
    %176 = vmatprep.subr.mxu0 0.0
    %177 = vmatpush1.msra.mxu0 0.0
    %178 = vmatprep.subr.mxu0 0.0
    %179 = vmatpush1.msra.mxu0 0.0
    %180 = vmatprep.subr.mxu0 0.0
    %181 = vmatpush1.msra.mxu0 %v151
    %182 = vmatprep.subr.mxu0 0.0
    %183 = vmatpush1.msra.mxu0 %v150
    %184 = vmatprep.subr.mxu0 0.0
    %185 = vmatpush1.msra.mxu0 %v149
    %186 = vmatprep.subr.mxu0 0.0
    %187 = vmatpush1.msra.mxu0 %v148
    %188 = vmatprep.subr.mxu0 0.0
    %189 = vmatpush2.msra.mxu0 0.0
    %190 = vmatprep.subr.mxu0 0.0
    %191 = vmatpush2.msra.mxu0 0.0
    %192 = vmatprep.subr.mxu0 0.0
    %193 = vmatpush2.msra.mxu0 0.0
    %194 = vmatprep.subr.mxu0 0.0
    %195 = vmatpush2.msra.mxu0 0.0
    %196 = vmatprep.subr.mxu0 0.0
    %197 = vmatpush2.msra.mxu0 0.0
    %198 = vmatprep.subr.mxu0 0.0
    %199 = vmatpush2.msra.mxu0 0.0
    %200 = vmatprep.subr.mxu0 0.0
    %201 = vmatpush2.msra.mxu0 0.0
    %202 = vmatprep.subr.mxu0 0.0
    %203 = vmatpush2.msra.mxu0 0.0
    %204 = vmatprep.subr.mxu0 0.0
    %205 = vmatpush2.msra.mxu0 0.0
    %206 = vmatprep.subr.mxu0 0.0
    %207 = vmatpush2.msra.mxu0 0.0
    %208 = vmatprep.subr.mxu0 0.0
    %209 = vmatpush2.msra.mxu0 0.0
    %210 = vmatprep.subr.mxu0 0.0
    %211 = vmatpush2.msra.mxu0 0.0
    %212 = vmatprep.subr.mxu0 0.0
    %213 = vmatpush2.msra.mxu0 0.0
    %214 = vmatprep.subr.mxu0 0.0
    %215 = vmatpush2.msra.mxu0 0.0
    %216 = vmatprep.subr.mxu0 0.0
    %217 = vmatpush2.msra.mxu0 0.0
    %218 = vmatprep.subr.mxu0 0.0
    %219 = vmatpush2.msra.mxu0 0.0
    %220 = vmatprep.mubr.f32.mxu0 0.0
    %221 = vmatmul.mubr.f32.gmra.mxu0 %v154
    %v222 = vpop.f32.mrf.mxu0
    %v223 = vadd.f32 0.0, %v222
    %v224 = vpop.f32.mrf.mxu0
    %225 = vdwg.mxu0
    %v226 = vadd.f32 %v145, %v223
    %v227 = vtanh.pop %v226
    %v228 = vld [vmem:[%s2] sm:$0xff]
    %v229 = vld [vmem:[%s2 + $0x8] sm:$0xff]
    %v230 = vld [vmem:[%s2 + $0x10] sm:$0xff]
    %v231 = vld [vmem:[%s2 + $0x18] sm:$0xff]
    %s232 = scalar_lea.vmem [#allocation6], 32
    %v233 = vld [vmem:[%s232] sm:$0xff]
    %v234 = vld [vmem:[%s232 + $0x8] sm:$0xff]
    %v235 = vld [vmem:[%s232 + $0x10] sm:$0xff]
    %v236 = vld [vmem:[%s232 + $0x18] sm:$0xff]
    %237 = vmatprep.subr.mxu0 0.0
    %238 = vmatpush1.msra.mxu0 0.0
    %239 = vmatprep.subr.mxu0 0.0
    %240 = vmatpush1.msra.mxu0 0.0
    %241 = vmatprep.subr.mxu0 0.0
    %242 = vmatpush1.msra.mxu0 0.0
    %243 = vmatprep.subr.mxu0 0.0
    %244 = vmatpush1.msra.mxu0 0.0
    %245 = vmatprep.subr.mxu0 0.0
    %246 = vmatpush1.msra.mxu0 0.0
    %247 = vmatprep.subr.mxu0 0.0
    %248 = vmatpush1.msra.mxu0 0.0
    %249 = vmatprep.subr.mxu0 0.0
    %250 = vmatpush1.msra.mxu0 0.0
    %251 = vmatprep.subr.mxu0 0.0
    %252 = vmatpush1.msra.mxu0 0.0
    %253 = vmatprep.subr.mxu0 0.0
    %254 = vmatpush1.msra.mxu0 0.0
    %255 = vmatprep.subr.mxu0 0.0
    %256 = vmatpush1.msra.mxu0 0.0
    %257 = vmatprep.subr.mxu0 0.0
    %258 = vmatpush1.msra.mxu0 0.0
    %259 = vmatprep.subr.mxu0 0.0
    %260 = vmatpush1.msra.mxu0 0.0
    %261 = vmatprep.subr.mxu0 0.0
    %262 = vmatpush1.msra.mxu0 %v236
    %263 = vmatprep.subr.mxu0 0.0
    %264 = vmatpush1.msra.mxu0 %v235
    %265 = vmatprep.subr.mxu0 0.0
    %266 = vmatpush1.msra.mxu0 %v234
    %267 = vmatprep.subr.mxu0 0.0
    %268 = vmatpush1.msra.mxu0 %v233
    %269 = vmatprep.subr.mxu0 0.0
    %270 = vmatpush2.msra.mxu0 0.0
    %271 = vmatprep.subr.mxu0 0.0
    %272 = vmatpush2.msra.mxu0 0.0
    %273 = vmatprep.subr.mxu0 0.0
    %274 = vmatpush2.msra.mxu0 0.0
    %275 = vmatprep.subr.mxu0 0.0
    %276 = vmatpush2.msra.mxu0 0.0
    %277 = vmatprep.subr.mxu0 0.0
    %278 = vmatpush2.msra.mxu0 0.0
    %279 = vmatprep.subr.mxu0 0.0
    %280 = vmatpush2.msra.mxu0 0.0
    %281 = vmatprep.subr.mxu0 0.0
    %282 = vmatpush2.msra.mxu0 0.0
    %283 = vmatprep.subr.mxu0 0.0
    %284 = vmatpush2.msra.mxu0 0.0
    %285 = vmatprep.subr.mxu0 0.0
    %286 = vmatpush2.msra.mxu0 0.0
    %287 = vmatprep.subr.mxu0 0.0
    %288 = vmatpush2.msra.mxu0 0.0
    %289 = vmatprep.subr.mxu0 0.0
    %290 = vmatpush2.msra.mxu0 0.0
    %291 = vmatprep.subr.mxu0 0.0
    %292 = vmatpush2.msra.mxu0 0.0
    %293 = vmatprep.subr.mxu0 0.0
    %294 = vmatpush2.msra.mxu0 0.0
    %295 = vmatprep.subr.mxu0 0.0
    %296 = vmatpush2.msra.mxu0 0.0
    %297 = vmatprep.subr.mxu0 0.0
    %298 = vmatpush2.msra.mxu0 0.0
    %299 = vmatprep.subr.mxu0 0.0
    %300 = vmatpush2.msra.mxu0 0.0
    %301 = vmatprep.mubr.f32.mxu0 0.0
    %302 = vmatmul.mubr.f32.gmra.mxu0 %v154
    %v303 = vpop.f32.mrf.mxu0
    %v304 = vadd.f32 0.0, %v303
    %v305 = vpop.f32.mrf.mxu0
    %306 = vdwg.mxu0
    %v308 = vsel %vm152, %v227, 0
    %310 = vmatprep.subr.mxu0 0.0
    %311 = vmatpush1.msra.mxu0 0.0
    %312 = vmatprep.subr.mxu0 0.0
    %313 = vmatpush1.msra.mxu0 0.0
    %314 = vmatprep.subr.mxu0 0.0
    %315 = vmatpush1.msra.mxu0 0.0
    %316 = vmatprep.subr.mxu0 0.0
    %317 = vmatpush1.msra.mxu0 0.0
    %318 = vmatprep.subr.mxu0 0.0
    %319 = vmatpush1.msra.mxu0 0.0
    %320 = vmatprep.subr.mxu0 0.0
    %321 = vmatpush1.msra.mxu0 0.0
    %322 = vmatprep.subr.mxu0 0.0
    %323 = vmatpush1.msra.mxu0 0.0
    %324 = vmatprep.subr.mxu0 0.0
    %325 = vmatpush1.msra.mxu0 0.0
    %326 = vmatprep.subr.mxu0 0.0
    %327 = vmatpush1.msra.mxu0 0.0
    %328 = vmatprep.subr.mxu0 0.0
    %329 = vmatpush1.msra.mxu0 0.0
    %330 = vmatprep.subr.mxu0 0.0
    %331 = vmatpush1.msra.mxu0 0.0
    %332 = vmatprep.subr.mxu0 0.0
    %333 = vmatpush1.msra.mxu0 0.0
    %334 = vmatprep.subr.mxu0 0.0
    %335 = vmatpush1.msra.mxu0 %v231
    %336 = vmatprep.subr.mxu0 0.0
    %337 = vmatpush1.msra.mxu0 %v230
    %338 = vmatprep.subr.mxu0 0.0
    %339 = vmatpush1.msra.mxu0 %v229
    %340 = vmatprep.subr.mxu0 0.0
    %341 = vmatpush1.msra.mxu0 %v228
    %342 = vmatprep.subr.mxu0 0.0
    %343 = vmatpush2.msra.mxu0 0.0
    %344 = vmatprep.subr.mxu0 0.0
    %345 = vmatpush2.msra.mxu0 0.0
    %346 = vmatprep.subr.mxu0 0.0
    %347 = vmatpush2.msra.mxu0 0.0
    %348 = vmatprep.subr.mxu0 0.0
    %349 = vmatpush2.msra.mxu0 0.0
    %350 = vmatprep.subr.mxu0 0.0
    %351 = vmatpush2.msra.mxu0 0.0
    %352 = vmatprep.subr.mxu0 0.0
    %353 = vmatpush2.msra.mxu0 0.0
    %354 = vmatprep.subr.mxu0 0.0
    %355 = vmatpush2.msra.mxu0 0.0
    %356 = vmatprep.subr.mxu0 0.0
    %357 = vmatpush2.msra.mxu0 0.0
    %358 = vmatprep.subr.mxu0 0.0
    %359 = vmatpush2.msra.mxu0 0.0
    %360 = vmatprep.subr.mxu0 0.0
    %361 = vmatpush2.msra.mxu0 0.0
    %362 = vmatprep.subr.mxu0 0.0
    %363 = vmatpush2.msra.mxu0 0.0
    %364 = vmatprep.subr.mxu0 0.0
    %365 = vmatpush2.msra.mxu0 0.0
    %366 = vmatprep.subr.mxu0 0.0
    %367 = vmatpush2.msra.mxu0 0.0
    %368 = vmatprep.subr.mxu0 0.0
    %369 = vmatpush2.msra.mxu0 0.0
    %370 = vmatprep.subr.mxu0 0.0
    %371 = vmatpush2.msra.mxu0 0.0
    %372 = vmatprep.subr.mxu0 0.0
    %373 = vmatpush2.msra.mxu0 0.0
    %374 = vmatprep.mubr.f32.mxu0 0.0
    %375 = vmatmul.mubr.f32.gmra.mxu0 %v308
    %v376 = vpop.f32.mrf.mxu0
    %v377 = vadd.f32 %v304, %v376
    %v378 = vpop.f32.mrf.mxu0
    %379 = vdwg.mxu0
    %v381 = vrot.slane %v66, 1
    %v383 = vadd.f32 %v377, %v381
    %v384 = vtanh.pop %v383
    %vm385 = vcmask 253952
    %386 = vst.msk [vmem:[#allocation2] sm:$0x1] %vm385, %v384
    %v387 = vld [vmem:[#allocation6] sm:$0xff]
    %v388 = vld [vmem:[#allocation6 + $0x8] sm:$0xff]
    %v389 = vld [vmem:[#allocation6 + $0x10] sm:$0xff]
    %v390 = vld [vmem:[#allocation6 + $0x18] sm:$0xff]
    %391 = vmatprep.subr.mxu0 0.0
    %392 = vmatpush1.msra.mxu0 0.0
    %393 = vmatprep.subr.mxu0 0.0
    %394 = vmatpush1.msra.mxu0 0.0
    %395 = vmatprep.subr.mxu0 0.0
    %396 = vmatpush1.msra.mxu0 0.0
    %397 = vmatprep.subr.mxu0 0.0
    %398 = vmatpush1.msra.mxu0 0.0
    %399 = vmatprep.subr.mxu0 0.0
    %400 = vmatpush1.msra.mxu0 0.0
    %401 = vmatprep.subr.mxu0 0.0
    %402 = vmatpush1.msra.mxu0 0.0
    %403 = vmatprep.subr.mxu0 0.0
    %404 = vmatpush1.msra.mxu0 0.0
    %405 = vmatprep.subr.mxu0 0.0
    %406 = vmatpush1.msra.mxu0 0.0
    %407 = vmatprep.subr.mxu0 0.0
    %408 = vmatpush1.msra.mxu0 0.0
    %409 = vmatprep.subr.mxu0 0.0
    %410 = vmatpush1.msra.mxu0 0.0
    %411 = vmatprep.subr.mxu0 0.0
    %412 = vmatpush1.msra.mxu0 0.0
    %413 = vmatprep.subr.mxu0 0.0
    %414 = vmatpush1.msra.mxu0 0.0
    %415 = vmatprep.subr.mxu0 0.0
    %416 = vmatpush1.msra.mxu0 %v390
    %417 = vmatprep.subr.mxu0 0.0
    %418 = vmatpush1.msra.mxu0 %v389
    %419 = vmatprep.subr.mxu0 0.0
    %420 = vmatpush1.msra.mxu0 %v388
    %421 = vmatprep.subr.mxu0 0.0
    %422 = vmatpush1.msra.mxu0 %v387
    %423 = vmatprep.subr.mxu0 0.0
    %424 = vmatpush2.msra.mxu0 0.0
    %425 = vmatprep.subr.mxu0 0.0
    %426 = vmatpush2.msra.mxu0 0.0
    %427 = vmatprep.subr.mxu0 0.0
    %428 = vmatpush2.msra.mxu0 0.0
    %429 = vmatprep.subr.mxu0 0.0
    %430 = vmatpush2.msra.mxu0 0.0
    %431 = vmatprep.subr.mxu0 0.0
    %432 = vmatpush2.msra.mxu0 0.0
    %433 = vmatprep.subr.mxu0 0.0
    %434 = vmatpush2.msra.mxu0 0.0
    %435 = vmatprep.subr.mxu0 0.0
    %436 = vmatpush2.msra.mxu0 0.0
    %437 = vmatprep.subr.mxu0 0.0
    %438 = vmatpush2.msra.mxu0 0.0
    %439 = vmatprep.subr.mxu0 0.0
    %440 = vmatpush2.msra.mxu0 0.0
    %441 = vmatprep.subr.mxu0 0.0
    %442 = vmatpush2.msra.mxu0 0.0
    %443 = vmatprep.subr.mxu0 0.0
    %444 = vmatpush2.msra.mxu0 0.0
    %445 = vmatprep.subr.mxu0 0.0
    %446 = vmatpush2.msra.mxu0 0.0
    %447 = vmatprep.subr.mxu0 0.0
    %448 = vmatpush2.msra.mxu0 0.0
    %449 = vmatprep.subr.mxu0 0.0
    %450 = vmatpush2.msra.mxu0 0.0
    %451 = vmatprep.subr.mxu0 0.0
    %452 = vmatpush2.msra.mxu0 0.0
    %453 = vmatprep.subr.mxu0 0.0
    %454 = vmatpush2.msra.mxu0 0.0
    %455 = vmatprep.mubr.f32.mxu0 0.0
    %456 = vmatmul.mubr.f32.gmra.mxu0 %v308
    %v457 = vpop.f32.mrf.mxu0
    %v458 = vadd.f32 0.0, %v457
    %v459 = vpop.f32.mrf.mxu0
    %460 = vdwg.mxu0
    %v462 = vrot.slane %v458, 7
    %v464 = vadd.f32 %v145, %v462
    %v465 = vtanh.pop %v464
    %v466 = vld [vmem:[%s2] sm:$0xff]
    %v467 = vld [vmem:[%s2 + $0x8] sm:$0xff]
    %v468 = vld [vmem:[%s2 + $0x10] sm:$0xff]
    %v469 = vld [vmem:[%s2 + $0x18] sm:$0xff]
    %v470 = vld [vmem:[%s232] sm:$0xff]
    %v471 = vld [vmem:[%s232 + $0x8] sm:$0xff]
    %v472 = vld [vmem:[%s232 + $0x10] sm:$0xff]
    %v473 = vld [vmem:[%s232 + $0x18] sm:$0xff]
    %v475 = vsel %vm152, %v384, 0
    %477 = vmatprep.subr.mxu0 0.0
    %478 = vmatpush1.msra.mxu0 0.0
    %479 = vmatprep.subr.mxu0 0.0
    %480 = vmatpush1.msra.mxu0 0.0
    %481 = vmatprep.subr.mxu0 0.0
    %482 = vmatpush1.msra.mxu0 0.0
    %483 = vmatprep.subr.mxu0 0.0
    %484 = vmatpush1.msra.mxu0 0.0
    %485 = vmatprep.subr.mxu0 0.0
    %486 = vmatpush1.msra.mxu0 0.0
    %487 = vmatprep.subr.mxu0 0.0
    %488 = vmatpush1.msra.mxu0 0.0
    %489 = vmatprep.subr.mxu0 0.0
    %490 = vmatpush1.msra.mxu0 0.0
    %491 = vmatprep.subr.mxu0 0.0
    %492 = vmatpush1.msra.mxu0 0.0
    %493 = vmatprep.subr.mxu0 0.0
    %494 = vmatpush1.msra.mxu0 0.0
    %495 = vmatprep.subr.mxu0 0.0
    %496 = vmatpush1.msra.mxu0 0.0
    %497 = vmatprep.subr.mxu0 0.0
    %498 = vmatpush1.msra.mxu0 0.0
    %499 = vmatprep.subr.mxu0 0.0
    %500 = vmatpush1.msra.mxu0 0.0
    %501 = vmatprep.subr.mxu0 0.0
    %502 = vmatpush1.msra.mxu0 %v473
    %503 = vmatprep.subr.mxu0 0.0
    %504 = vmatpush1.msra.mxu0 %v472
    %505 = vmatprep.subr.mxu0 0.0
    %506 = vmatpush1.msra.mxu0 %v471
    %507 = vmatprep.subr.mxu0 0.0
    %508 = vmatpush1.msra.mxu0 %v470
    %509 = vmatprep.subr.mxu0 0.0
    %510 = vmatpush2.msra.mxu0 0.0
    %511 = vmatprep.subr.mxu0 0.0
    %512 = vmatpush2.msra.mxu0 0.0
    %513 = vmatprep.subr.mxu0 0.0
    %514 = vmatpush2.msra.mxu0 0.0
    %515 = vmatprep.subr.mxu0 0.0
    %516 = vmatpush2.msra.mxu0 0.0
    %517 = vmatprep.subr.mxu0 0.0
    %518 = vmatpush2.msra.mxu0 0.0
    %519 = vmatprep.subr.mxu0 0.0
    %520 = vmatpush2.msra.mxu0 0.0
    %521 = vmatprep.subr.mxu0 0.0
    %522 = vmatpush2.msra.mxu0 0.0
    %523 = vmatprep.subr.mxu0 0.0
    %524 = vmatpush2.msra.mxu0 0.0
    %525 = vmatprep.subr.mxu0 0.0
    %526 = vmatpush2.msra.mxu0 0.0
    %527 = vmatprep.subr.mxu0 0.0
    %528 = vmatpush2.msra.mxu0 0.0
    %529 = vmatprep.subr.mxu0 0.0
    %530 = vmatpush2.msra.mxu0 0.0
    %531 = vmatprep.subr.mxu0 0.0
    %532 = vmatpush2.msra.mxu0 0.0
    %533 = vmatprep.subr.mxu0 0.0
    %534 = vmatpush2.msra.mxu0 0.0
    %535 = vmatprep.subr.mxu0 0.0
    %536 = vmatpush2.msra.mxu0 0.0
    %537 = vmatprep.subr.mxu0 0.0
    %538 = vmatpush2.msra.mxu0 0.0
    %539 = vmatprep.subr.mxu0 0.0
    %540 = vmatpush2.msra.mxu0 0.0
    %541 = vmatprep.mubr.f32.mxu0 0.0
    %542 = vmatmul.mubr.f32.gmra.mxu0 %v475
    %v543 = vpop.f32.mrf.mxu0
    %v544 = vadd.f32 0.0, %v543
    %v545 = vpop.f32.mrf.mxu0
    %546 = vdwg.mxu0
    %v548 = vrot.slane %v465, 1
    %v549 = vsel %vm152, %v548, 0
    %551 = vmatprep.subr.mxu0 0.0
    %552 = vmatpush1.msra.mxu0 0.0
    %553 = vmatprep.subr.mxu0 0.0
    %554 = vmatpush1.msra.mxu0 0.0
    %555 = vmatprep.subr.mxu0 0.0
    %556 = vmatpush1.msra.mxu0 0.0
    %557 = vmatprep.subr.mxu0 0.0
    %558 = vmatpush1.msra.mxu0 0.0
    %559 = vmatprep.subr.mxu0 0.0
    %560 = vmatpush1.msra.mxu0 0.0
    %561 = vmatprep.subr.mxu0 0.0
    %562 = vmatpush1.msra.mxu0 0.0
    %563 = vmatprep.subr.mxu0 0.0
    %564 = vmatpush1.msra.mxu0 0.0
    %565 = vmatprep.subr.mxu0 0.0
    %566 = vmatpush1.msra.mxu0 0.0
    %567 = vmatprep.subr.mxu0 0.0
    %568 = vmatpush1.msra.mxu0 0.0
    %569 = vmatprep.subr.mxu0 0.0
    %570 = vmatpush1.msra.mxu0 0.0
    %571 = vmatprep.subr.mxu0 0.0
    %572 = vmatpush1.msra.mxu0 0.0
    %573 = vmatprep.subr.mxu0 0.0
    %574 = vmatpush1.msra.mxu0 0.0
    %575 = vmatprep.subr.mxu0 0.0
    %576 = vmatpush1.msra.mxu0 %v469
    %577 = vmatprep.subr.mxu0 0.0
    %578 = vmatpush1.msra.mxu0 %v468
    %579 = vmatprep.subr.mxu0 0.0
    %580 = vmatpush1.msra.mxu0 %v467
    %581 = vmatprep.subr.mxu0 0.0
    %582 = vmatpush1.msra.mxu0 %v466
    %583 = vmatprep.subr.mxu0 0.0
    %584 = vmatpush2.msra.mxu0 0.0
    %585 = vmatprep.subr.mxu0 0.0
    %586 = vmatpush2.msra.mxu0 0.0
    %587 = vmatprep.subr.mxu0 0.0
    %588 = vmatpush2.msra.mxu0 0.0
    %589 = vmatprep.subr.mxu0 0.0
    %590 = vmatpush2.msra.mxu0 0.0
    %591 = vmatprep.subr.mxu0 0.0
    %592 = vmatpush2.msra.mxu0 0.0
    %593 = vmatprep.subr.mxu0 0.0
    %594 = vmatpush2.msra.mxu0 0.0
    %595 = vmatprep.subr.mxu0 0.0
    %596 = vmatpush2.msra.mxu0 0.0
    %597 = vmatprep.subr.mxu0 0.0
    %598 = vmatpush2.msra.mxu0 0.0
    %599 = vmatprep.subr.mxu0 0.0
    %600 = vmatpush2.msra.mxu0 0.0
    %601 = vmatprep.subr.mxu0 0.0
    %602 = vmatpush2.msra.mxu0 0.0
    %603 = vmatprep.subr.mxu0 0.0
    %604 = vmatpush2.msra.mxu0 0.0
    %605 = vmatprep.subr.mxu0 0.0
    %606 = vmatpush2.msra.mxu0 0.0
    %607 = vmatprep.subr.mxu0 0.0
    %608 = vmatpush2.msra.mxu0 0.0
    %609 = vmatprep.subr.mxu0 0.0
    %610 = vmatpush2.msra.mxu0 0.0
    %611 = vmatprep.subr.mxu0 0.0
    %612 = vmatpush2.msra.mxu0 0.0
    %613 = vmatprep.subr.mxu0 0.0
    %614 = vmatpush2.msra.mxu0 0.0
    %615 = vmatprep.mubr.f32.mxu0 0.0
    %616 = vmatmul.mubr.f32.gmra.mxu0 %v549
    %v617 = vpop.f32.mrf.mxu0
    %v618 = vadd.f32 %v544, %v617
    %v619 = vpop.f32.mrf.mxu0
    %620 = vdwg.mxu0
    %v621 = vadd.f32 %v618, %v381
    %v622 = vtanh.pop %v621
    %623 = vst.msk [vmem:[#allocation2 + $0x1] sm:$0x1] %vm385, %v622
    %v624 = vld [vmem:[#allocation6] sm:$0xff]
    %v625 = vld [vmem:[#allocation6 + $0x8] sm:$0xff]
    %v626 = vld [vmem:[#allocation6 + $0x10] sm:$0xff]
    %v627 = vld [vmem:[#allocation6 + $0x18] sm:$0xff]
    %628 = vmatprep.subr.mxu0 0.0
    %629 = vmatpush1.msra.mxu0 0.0
    %630 = vmatprep.subr.mxu0 0.0
    %631 = vmatpush1.msra.mxu0 0.0
    %632 = vmatprep.subr.mxu0 0.0
    %633 = vmatpush1.msra.mxu0 0.0
    %634 = vmatprep.subr.mxu0 0.0
    %635 = vmatpush1.msra.mxu0 0.0
    %636 = vmatprep.subr.mxu0 0.0
    %637 = vmatpush1.msra.mxu0 0.0
    %638 = vmatprep.subr.mxu0 0.0
    %639 = vmatpush1.msra.mxu0 0.0
    %640 = vmatprep.subr.mxu0 0.0
    %641 = vmatpush1.msra.mxu0 0.0
    %642 = vmatprep.subr.mxu0 0.0
    %643 = vmatpush1.msra.mxu0 0.0
    %644 = vmatprep.subr.mxu0 0.0
    %645 = vmatpush1.msra.mxu0 0.0
    %646 = vmatprep.subr.mxu0 0.0
    %647 = vmatpush1.msra.mxu0 0.0
    %648 = vmatprep.subr.mxu0 0.0
    %649 = vmatpush1.msra.mxu0 0.0
    %650 = vmatprep.subr.mxu0 0.0
    %651 = vmatpush1.msra.mxu0 0.0
    %652 = vmatprep.subr.mxu0 0.0
    %653 = vmatpush1.msra.mxu0 %v627
    %654 = vmatprep.subr.mxu0 0.0
    %655 = vmatpush1.msra.mxu0 %v626
    %656 = vmatprep.subr.mxu0 0.0
    %657 = vmatpush1.msra.mxu0 %v625
    %658 = vmatprep.subr.mxu0 0.0
    %659 = vmatpush1.msra.mxu0 %v624
    %660 = vmatprep.subr.mxu0 0.0
    %661 = vmatpush2.msra.mxu0 0.0
    %662 = vmatprep.subr.mxu0 0.0
    %663 = vmatpush2.msra.mxu0 0.0
    %664 = vmatprep.subr.mxu0 0.0
    %665 = vmatpush2.msra.mxu0 0.0
    %666 = vmatprep.subr.mxu0 0.0
    %667 = vmatpush2.msra.mxu0 0.0
    %668 = vmatprep.subr.mxu0 0.0
    %669 = vmatpush2.msra.mxu0 0.0
    %670 = vmatprep.subr.mxu0 0.0
    %671 = vmatpush2.msra.mxu0 0.0
    %672 = vmatprep.subr.mxu0 0.0
    %673 = vmatpush2.msra.mxu0 0.0
    %674 = vmatprep.subr.mxu0 0.0
    %675 = vmatpush2.msra.mxu0 0.0
    %676 = vmatprep.subr.mxu0 0.0
    %677 = vmatpush2.msra.mxu0 0.0
    %678 = vmatprep.subr.mxu0 0.0
    %679 = vmatpush2.msra.mxu0 0.0
    %680 = vmatprep.subr.mxu0 0.0
    %681 = vmatpush2.msra.mxu0 0.0
    %682 = vmatprep.subr.mxu0 0.0
    %683 = vmatpush2.msra.mxu0 0.0
    %684 = vmatprep.subr.mxu0 0.0
    %685 = vmatpush2.msra.mxu0 0.0
    %686 = vmatprep.subr.mxu0 0.0
    %687 = vmatpush2.msra.mxu0 0.0
    %688 = vmatprep.subr.mxu0 0.0
    %689 = vmatpush2.msra.mxu0 0.0
    %690 = vmatprep.subr.mxu0 0.0
    %691 = vmatpush2.msra.mxu0 0.0
    %692 = vmatprep.mubr.f32.mxu0 0.0
    %693 = vmatmul.mubr.f32.gmra.mxu0 %v549
    %v694 = vpop.f32.mrf.mxu0
    %v695 = vadd.f32 0.0, %v694
    %v696 = vpop.f32.mrf.mxu0
    %697 = vdwg.mxu0
    %v699 = vrot.slane %v695, 6
    %v701 = vadd.f32 %v145, %v699
    %v702 = vtanh.pop %v701
    %v703 = vld [vmem:[%s2] sm:$0xff]
    %v704 = vld [vmem:[%s2 + $0x8] sm:$0xff]
    %v705 = vld [vmem:[%s2 + $0x10] sm:$0xff]
    %v706 = vld [vmem:[%s2 + $0x18] sm:$0xff]
    %v707 = vld [vmem:[%s232] sm:$0xff]
    %v708 = vld [vmem:[%s232 + $0x8] sm:$0xff]
    %v709 = vld [vmem:[%s232 + $0x10] sm:$0xff]
    %v710 = vld [vmem:[%s232 + $0x18] sm:$0xff]
    %v712 = vsel %vm152, %v622, 0
    %714 = vmatprep.subr.mxu0 0.0
    %715 = vmatpush1.msra.mxu0 0.0
    %716 = vmatprep.subr.mxu0 0.0
    %717 = vmatpush1.msra.mxu0 0.0
    %718 = vmatprep.subr.mxu0 0.0
    %719 = vmatpush1.msra.mxu0 0.0
    %720 = vmatprep.subr.mxu0 0.0
    %721 = vmatpush1.msra.mxu0 0.0
    %722 = vmatprep.subr.mxu0 0.0
    %723 = vmatpush1.msra.mxu0 0.0
    %724 = vmatprep.subr.mxu0 0.0
    %725 = vmatpush1.msra.mxu0 0.0
    %726 = vmatprep.subr.mxu0 0.0
    %727 = vmatpush1.msra.mxu0 0.0
    %728 = vmatprep.subr.mxu0 0.0
    %729 = vmatpush1.msra.mxu0 0.0
    %730 = vmatprep.subr.mxu0 0.0
    %731 = vmatpush1.msra.mxu0 0.0
    %732 = vmatprep.subr.mxu0 0.0
    %733 = vmatpush1.msra.mxu0 0.0
    %734 = vmatprep.subr.mxu0 0.0
    %735 = vmatpush1.msra.mxu0 0.0
    %736 = vmatprep.subr.mxu0 0.0
    %737 = vmatpush1.msra.mxu0 0.0
    %738 = vmatprep.subr.mxu0 0.0
    %739 = vmatpush1.msra.mxu0 %v710
    %740 = vmatprep.subr.mxu0 0.0
    %741 = vmatpush1.msra.mxu0 %v709
    %742 = vmatprep.subr.mxu0 0.0
    %743 = vmatpush1.msra.mxu0 %v708
    %744 = vmatprep.subr.mxu0 0.0
    %745 = vmatpush1.msra.mxu0 %v707
    %746 = vmatprep.subr.mxu0 0.0
    %747 = vmatpush2.msra.mxu0 0.0
    %748 = vmatprep.subr.mxu0 0.0
    %749 = vmatpush2.msra.mxu0 0.0
    %750 = vmatprep.subr.mxu0 0.0
    %751 = vmatpush2.msra.mxu0 0.0
    %752 = vmatprep.subr.mxu0 0.0
    %753 = vmatpush2.msra.mxu0 0.0
    %754 = vmatprep.subr.mxu0 0.0
    %755 = vmatpush2.msra.mxu0 0.0
    %756 = vmatprep.subr.mxu0 0.0
    %757 = vmatpush2.msra.mxu0 0.0
    %758 = vmatprep.subr.mxu0 0.0
    %759 = vmatpush2.msra.mxu0 0.0
    %760 = vmatprep.subr.mxu0 0.0
    %761 = vmatpush2.msra.mxu0 0.0
    %762 = vmatprep.subr.mxu0 0.0
    %763 = vmatpush2.msra.mxu0 0.0
    %764 = vmatprep.subr.mxu0 0.0
    %765 = vmatpush2.msra.mxu0 0.0
    %766 = vmatprep.subr.mxu0 0.0
    %767 = vmatpush2.msra.mxu0 0.0
    %768 = vmatprep.subr.mxu0 0.0
    %769 = vmatpush2.msra.mxu0 0.0
    %770 = vmatprep.subr.mxu0 0.0
    %771 = vmatpush2.msra.mxu0 0.0
    %772 = vmatprep.subr.mxu0 0.0
    %773 = vmatpush2.msra.mxu0 0.0
    %774 = vmatprep.subr.mxu0 0.0
    %775 = vmatpush2.msra.mxu0 0.0
    %776 = vmatprep.subr.mxu0 0.0
    %777 = vmatpush2.msra.mxu0 0.0
    %778 = vmatprep.mubr.f32.mxu0 0.0
    %779 = vmatmul.mubr.f32.gmra.mxu0 %v712
    %v780 = vpop.f32.mrf.mxu0
    %v781 = vadd.f32 0.0, %v780
    %v782 = vpop.f32.mrf.mxu0
    %783 = vdwg.mxu0
    %v785 = vrot.slane %v702, 2
    %v786 = vsel %vm152, %v785, 0
    %788 = vmatprep.subr.mxu0 0.0
    %789 = vmatpush1.msra.mxu0 0.0
    %790 = vmatprep.subr.mxu0 0.0
    %791 = vmatpush1.msra.mxu0 0.0
    %792 = vmatprep.subr.mxu0 0.0
    %793 = vmatpush1.msra.mxu0 0.0
    %794 = vmatprep.subr.mxu0 0.0
    %795 = vmatpush1.msra.mxu0 0.0
    %796 = vmatprep.subr.mxu0 0.0
    %797 = vmatpush1.msra.mxu0 0.0
    %798 = vmatprep.subr.mxu0 0.0
    %799 = vmatpush1.msra.mxu0 0.0
    %800 = vmatprep.subr.mxu0 0.0
    %801 = vmatpush1.msra.mxu0 0.0
    %802 = vmatprep.subr.mxu0 0.0
    %803 = vmatpush1.msra.mxu0 0.0
    %804 = vmatprep.subr.mxu0 0.0
    %805 = vmatpush1.msra.mxu0 0.0
    %806 = vmatprep.subr.mxu0 0.0
    %807 = vmatpush1.msra.mxu0 0.0
    %808 = vmatprep.subr.mxu0 0.0
    %809 = vmatpush1.msra.mxu0 0.0
    %810 = vmatprep.subr.mxu0 0.0
    %811 = vmatpush1.msra.mxu0 0.0
    %812 = vmatprep.subr.mxu0 0.0
    %813 = vmatpush1.msra.mxu0 %v706
    %814 = vmatprep.subr.mxu0 0.0
    %815 = vmatpush1.msra.mxu0 %v705
    %816 = vmatprep.subr.mxu0 0.0
    %817 = vmatpush1.msra.mxu0 %v704
    %818 = vmatprep.subr.mxu0 0.0
    %819 = vmatpush1.msra.mxu0 %v703
    %820 = vmatprep.subr.mxu0 0.0
    %821 = vmatpush2.msra.mxu0 0.0
    %822 = vmatprep.subr.mxu0 0.0
    %823 = vmatpush2.msra.mxu0 0.0
    %824 = vmatprep.subr.mxu0 0.0
    %825 = vmatpush2.msra.mxu0 0.0
    %826 = vmatprep.subr.mxu0 0.0
    %827 = vmatpush2.msra.mxu0 0.0
    %828 = vmatprep.subr.mxu0 0.0
    %829 = vmatpush2.msra.mxu0 0.0
    %830 = vmatprep.subr.mxu0 0.0
    %831 = vmatpush2.msra.mxu0 0.0
    %832 = vmatprep.subr.mxu0 0.0
    %833 = vmatpush2.msra.mxu0 0.0
    %834 = vmatprep.subr.mxu0 0.0
    %835 = vmatpush2.msra.mxu0 0.0
    %836 = vmatprep.subr.mxu0 0.0
    %837 = vmatpush2.msra.mxu0 0.0
    %838 = vmatprep.subr.mxu0 0.0
    %839 = vmatpush2.msra.mxu0 0.0
    %840 = vmatprep.subr.mxu0 0.0
    %841 = vmatpush2.msra.mxu0 0.0
    %842 = vmatprep.subr.mxu0 0.0
    %843 = vmatpush2.msra.mxu0 0.0
    %844 = vmatprep.subr.mxu0 0.0
    %845 = vmatpush2.msra.mxu0 0.0
    %846 = vmatprep.subr.mxu0 0.0
    %847 = vmatpush2.msra.mxu0 0.0
    %848 = vmatprep.subr.mxu0 0.0
    %849 = vmatpush2.msra.mxu0 0.0
    %850 = vmatprep.subr.mxu0 0.0
    %851 = vmatpush2.msra.mxu0 0.0
    %852 = vmatprep.mubr.f32.mxu0 0.0
    %853 = vmatmul.mubr.f32.gmra.mxu0 %v786
    %v854 = vpop.f32.mrf.mxu0
    %v855 = vadd.f32 %v781, %v854
    %v856 = vpop.f32.mrf.mxu0
    %857 = vdwg.mxu0
    %v858 = vadd.f32 %v855, %v381
    %v859 = vtanh.pop %v858
    %860 = vst.msk [vmem:[#allocation2 + $0x2] sm:$0x1] %vm385, %v859
    %v861 = vld [vmem:[#allocation6] sm:$0xff]
    %v862 = vld [vmem:[#allocation6 + $0x8] sm:$0xff]
    %v863 = vld [vmem:[#allocation6 + $0x10] sm:$0xff]
    %v864 = vld [vmem:[#allocation6 + $0x18] sm:$0xff]
    %865 = vmatprep.subr.mxu0 0.0
    %866 = vmatpush1.msra.mxu0 0.0
    %867 = vmatprep.subr.mxu0 0.0
    %868 = vmatpush1.msra.mxu0 0.0
    %869 = vmatprep.subr.mxu0 0.0
    %870 = vmatpush1.msra.mxu0 0.0
    %871 = vmatprep.subr.mxu0 0.0
    %872 = vmatpush1.msra.mxu0 0.0
    %873 = vmatprep.subr.mxu0 0.0
    %874 = vmatpush1.msra.mxu0 0.0
    %875 = vmatprep.subr.mxu0 0.0
    %876 = vmatpush1.msra.mxu0 0.0
    %877 = vmatprep.subr.mxu0 0.0
    %878 = vmatpush1.msra.mxu0 0.0
    %879 = vmatprep.subr.mxu0 0.0
    %880 = vmatpush1.msra.mxu0 0.0
    %881 = vmatprep.subr.mxu0 0.0
    %882 = vmatpush1.msra.mxu0 0.0
    %883 = vmatprep.subr.mxu0 0.0
    %884 = vmatpush1.msra.mxu0 0.0
    %885 = vmatprep.subr.mxu0 0.0
    %886 = vmatpush1.msra.mxu0 0.0
    %887 = vmatprep.subr.mxu0 0.0
    %888 = vmatpush1.msra.mxu0 0.0
    %889 = vmatprep.subr.mxu0 0.0
    %890 = vmatpush1.msra.mxu0 %v864
    %891 = vmatprep.subr.mxu0 0.0
    %892 = vmatpush1.msra.mxu0 %v863
    %893 = vmatprep.subr.mxu0 0.0
    %894 = vmatpush1.msra.mxu0 %v862
    %895 = vmatprep.subr.mxu0 0.0
    %896 = vmatpush1.msra.mxu0 %v861
    %897 = vmatprep.subr.mxu0 0.0
    %898 = vmatpush2.msra.mxu0 0.0
    %899 = vmatprep.subr.mxu0 0.0
    %900 = vmatpush2.msra.mxu0 0.0
    %901 = vmatprep.subr.mxu0 0.0
    %902 = vmatpush2.msra.mxu0 0.0
    %903 = vmatprep.subr.mxu0 0.0
    %904 = vmatpush2.msra.mxu0 0.0
    %905 = vmatprep.subr.mxu0 0.0
    %906 = vmatpush2.msra.mxu0 0.0
    %907 = vmatprep.subr.mxu0 0.0
    %908 = vmatpush2.msra.mxu0 0.0
    %909 = vmatprep.subr.mxu0 0.0
    %910 = vmatpush2.msra.mxu0 0.0
    %911 = vmatprep.subr.mxu0 0.0
    %912 = vmatpush2.msra.mxu0 0.0
    %913 = vmatprep.subr.mxu0 0.0
    %914 = vmatpush2.msra.mxu0 0.0
    %915 = vmatprep.subr.mxu0 0.0
    %916 = vmatpush2.msra.mxu0 0.0
    %917 = vmatprep.subr.mxu0 0.0
    %918 = vmatpush2.msra.mxu0 0.0
    %919 = vmatprep.subr.mxu0 0.0
    %920 = vmatpush2.msra.mxu0 0.0
    %921 = vmatprep.subr.mxu0 0.0
    %922 = vmatpush2.msra.mxu0 0.0
    %923 = vmatprep.subr.mxu0 0.0
    %924 = vmatpush2.msra.mxu0 0.0
    %925 = vmatprep.subr.mxu0 0.0
    %926 = vmatpush2.msra.mxu0 0.0
    %927 = vmatprep.subr.mxu0 0.0
    %928 = vmatpush2.msra.mxu0 0.0
    %929 = vmatprep.mubr.f32.mxu0 0.0
    %930 = vmatmul.mubr.f32.gmra.mxu0 %v786
    %v931 = vpop.f32.mrf.mxu0
    %v932 = vadd.f32 0.0, %v931
    %v933 = vpop.f32.mrf.mxu0
    %934 = vdwg.mxu0
    %v936 = vrot.slane %v932, 5
    %v938 = vadd.f32 %v145, %v936
    %v939 = vtanh.pop %v938
    %v940 = vld [vmem:[%s2] sm:$0xff]
    %v941 = vld [vmem:[%s2 + $0x8] sm:$0xff]
    %v942 = vld [vmem:[%s2 + $0x10] sm:$0xff]
    %v943 = vld [vmem:[%s2 + $0x18] sm:$0xff]
    %v944 = vld [vmem:[%s232] sm:$0xff]
    %v945 = vld [vmem:[%s232 + $0x8] sm:$0xff]
    %v946 = vld [vmem:[%s232 + $0x10] sm:$0xff]
    %v947 = vld [vmem:[%s232 + $0x18] sm:$0xff]
    %v949 = vsel %vm152, %v859, 0
    %951 = vmatprep.subr.mxu0 0.0
    %952 = vmatpush1.msra.mxu0 0.0
    %953 = vmatprep.subr.mxu0 0.0
    %954 = vmatpush1.msra.mxu0 0.0
    %955 = vmatprep.subr.mxu0 0.0
    %956 = vmatpush1.msra.mxu0 0.0
    %957 = vmatprep.subr.mxu0 0.0
    %958 = vmatpush1.msra.mxu0 0.0
    %959 = vmatprep.subr.mxu0 0.0
    %960 = vmatpush1.msra.mxu0 0.0
    %961 = vmatprep.subr.mxu0 0.0
    %962 = vmatpush1.msra.mxu0 0.0
    %963 = vmatprep.subr.mxu0 0.0
    %964 = vmatpush1.msra.mxu0 0.0
    %965 = vmatprep.subr.mxu0 0.0
    %966 = vmatpush1.msra.mxu0 0.0
    %967 = vmatprep.subr.mxu0 0.0
    %968 = vmatpush1.msra.mxu0 0.0
    %969 = vmatprep.subr.mxu0 0.0
    %970 = vmatpush1.msra.mxu0 0.0
    %971 = vmatprep.subr.mxu0 0.0
    %972 = vmatpush1.msra.mxu0 0.0
    %973 = vmatprep.subr.mxu0 0.0
    %974 = vmatpush1.msra.mxu0 0.0
    %975 = vmatprep.subr.mxu0 0.0
    %976 = vmatpush1.msra.mxu0 %v947
    %977 = vmatprep.subr.mxu0 0.0
    %978 = vmatpush1.msra.mxu0 %v946
    %979 = vmatprep.subr.mxu0 0.0
    %980 = vmatpush1.msra.mxu0 %v945
    %981 = vmatprep.subr.mxu0 0.0
    %982 = vmatpush1.msra.mxu0 %v944
    %983 = vmatprep.subr.mxu0 0.0
    %984 = vmatpush2.msra.mxu0 0.0
    %985 = vmatprep.subr.mxu0 0.0
    %986 = vmatpush2.msra.mxu0 0.0
    %987 = vmatprep.subr.mxu0 0.0
    %988 = vmatpush2.msra.mxu0 0.0
    %989 = vmatprep.subr.mxu0 0.0
    %990 = vmatpush2.msra.mxu0 0.0
    %991 = vmatprep.subr.mxu0 0.0
    %992 = vmatpush2.msra.mxu0 0.0
    %993 = vmatprep.subr.mxu0 0.0
    %994 = vmatpush2.msra.mxu0 0.0
    %995 = vmatprep.subr.mxu0 0.0
    %996 = vmatpush2.msra.mxu0 0.0
    %997 = vmatprep.subr.mxu0 0.0
    %998 = vmatpush2.msra.mxu0 0.0
    %999 = vmatprep.subr.mxu0 0.0
    %1000 = vmatpush2.msra.mxu0 0.0
    %1001 = vmatprep.subr.mxu0 0.0
    %1002 = vmatpush2.msra.mxu0 0.0
    %1003 = vmatprep.subr.mxu0 0.0
    %1004 = vmatpush2.msra.mxu0 0.0
    %1005 = vmatprep.subr.mxu0 0.0
    %1006 = vmatpush2.msra.mxu0 0.0
    %1007 = vmatprep.subr.mxu0 0.0
    %1008 = vmatpush2.msra.mxu0 0.0
    %1009 = vmatprep.subr.mxu0 0.0
    %1010 = vmatpush2.msra.mxu0 0.0
    %1011 = vmatprep.subr.mxu0 0.0
    %1012 = vmatpush2.msra.mxu0 0.0
    %1013 = vmatprep.subr.mxu0 0.0
    %1014 = vmatpush2.msra.mxu0 0.0
    %1015 = vmatprep.mubr.f32.mxu0 0.0
    %1016 = vmatmul.mubr.f32.gmra.mxu0 %v949
    %v1017 = vpop.f32.mrf.mxu0
    %v1018 = vadd.f32 0.0, %v1017
    %v1019 = vpop.f32.mrf.mxu0
    %1020 = vdwg.mxu0
    %v1022 = vrot.slane %v939, 3
    %v1023 = vsel %vm152, %v1022, 0
    %1025 = vmatprep.subr.mxu0 0.0
    %1026 = vmatpush1.msra.mxu0 0.0
    %1027 = vmatprep.subr.mxu0 0.0
    %1028 = vmatpush1.msra.mxu0 0.0
    %1029 = vmatprep.subr.mxu0 0.0
    %1030 = vmatpush1.msra.mxu0 0.0
    %1031 = vmatprep.subr.mxu0 0.0
    %1032 = vmatpush1.msra.mxu0 0.0
    %1033 = vmatprep.subr.mxu0 0.0
    %1034 = vmatpush1.msra.mxu0 0.0
    %1035 = vmatprep.subr.mxu0 0.0
    %1036 = vmatpush1.msra.mxu0 0.0
    %1037 = vmatprep.subr.mxu0 0.0
    %1038 = vmatpush1.msra.mxu0 0.0
    %1039 = vmatprep.subr.mxu0 0.0
    %1040 = vmatpush1.msra.mxu0 0.0
    %1041 = vmatprep.subr.mxu0 0.0
    %1042 = vmatpush1.msra.mxu0 0.0
    %1043 = vmatprep.subr.mxu0 0.0
    %1044 = vmatpush1.msra.mxu0 0.0
    %1045 = vmatprep.subr.mxu0 0.0
    %1046 = vmatpush1.msra.mxu0 0.0
    %1047 = vmatprep.subr.mxu0 0.0
    %1048 = vmatpush1.msra.mxu0 0.0
    %1049 = vmatprep.subr.mxu0 0.0
    %1050 = vmatpush1.msra.mxu0 %v943
    %1051 = vmatprep.subr.mxu0 0.0
    %1052 = vmatpush1.msra.mxu0 %v942
    %1053 = vmatprep.subr.mxu0 0.0
    %1054 = vmatpush1.msra.mxu0 %v941
    %1055 = vmatprep.subr.mxu0 0.0
    %1056 = vmatpush1.msra.mxu0 %v940
    %1057 = vmatprep.subr.mxu0 0.0
    %1058 = vmatpush2.msra.mxu0 0.0
    %1059 = vmatprep.subr.mxu0 0.0
    %1060 = vmatpush2.msra.mxu0 0.0
    %1061 = vmatprep.subr.mxu0 0.0
    %1062 = vmatpush2.msra.mxu0 0.0
    %1063 = vmatprep.subr.mxu0 0.0
    %1064 = vmatpush2.msra.mxu0 0.0
    %1065 = vmatprep.subr.mxu0 0.0
    %1066 = vmatpush2.msra.mxu0 0.0
    %1067 = vmatprep.subr.mxu0 0.0
    %1068 = vmatpush2.msra.mxu0 0.0
    %1069 = vmatprep.subr.mxu0 0.0
    %1070 = vmatpush2.msra.mxu0 0.0
    %1071 = vmatprep.subr.mxu0 0.0
    %1072 = vmatpush2.msra.mxu0 0.0
    %1073 = vmatprep.subr.mxu0 0.0
    %1074 = vmatpush2.msra.mxu0 0.0
    %1075 = vmatprep.subr.mxu0 0.0
    %1076 = vmatpush2.msra.mxu0 0.0
    %1077 = vmatprep.subr.mxu0 0.0
    %1078 = vmatpush2.msra.mxu0 0.0
    %1079 = vmatprep.subr.mxu0 0.0
    %1080 = vmatpush2.msra.mxu0 0.0
    %1081 = vmatprep.subr.mxu0 0.0
    %1082 = vmatpush2.msra.mxu0 0.0
    %1083 = vmatprep.subr.mxu0 0.0
    %1084 = vmatpush2.msra.mxu0 0.0
    %1085 = vmatprep.subr.mxu0 0.0
    %1086 = vmatpush2.msra.mxu0 0.0
    %1087 = vmatprep.subr.mxu0 0.0
    %1088 = vmatpush2.msra.mxu0 0.0
    %1089 = vmatprep.mubr.f32.mxu0 0.0
    %1090 = vmatmul.mubr.f32.gmra.mxu0 %v1023
    %v1091 = vpop.f32.mrf.mxu0
    %v1092 = vadd.f32 %v1018, %v1091
    %v1093 = vpop.f32.mrf.mxu0
    %1094 = vdwg.mxu0
    %v1095 = vadd.f32 %v1092, %v381
    %v1096 = vtanh.pop %v1095
    %1097 = vst.msk [vmem:[#allocation2 + $0x3] sm:$0x1] %vm385, %v1096
    %v1098 = vld [vmem:[#allocation6] sm:$0xff]
    %v1099 = vld [vmem:[#allocation6 + $0x8] sm:$0xff]
    %v1100 = vld [vmem:[#allocation6 + $0x10] sm:$0xff]
    %v1101 = vld [vmem:[#allocation6 + $0x18] sm:$0xff]
    %1102 = vmatprep.subr.mxu0 0.0
    %1103 = vmatpush1.msra.mxu0 0.0
    %1104 = vmatprep.subr.mxu0 0.0
    %1105 = vmatpush1.msra.mxu0 0.0
    %1106 = vmatprep.subr.mxu0 0.0
    %1107 = vmatpush1.msra.mxu0 0.0
    %1108 = vmatprep.subr.mxu0 0.0
    %1109 = vmatpush1.msra.mxu0 0.0
    %1110 = vmatprep.subr.mxu0 0.0
    %1111 = vmatpush1.msra.mxu0 0.0
    %1112 = vmatprep.subr.mxu0 0.0
    %1113 = vmatpush1.msra.mxu0 0.0
    %1114 = vmatprep.subr.mxu0 0.0
    %1115 = vmatpush1.msra.mxu0 0.0
    %1116 = vmatprep.subr.mxu0 0.0
    %1117 = vmatpush1.msra.mxu0 0.0
    %1118 = vmatprep.subr.mxu0 0.0
    %1119 = vmatpush1.msra.mxu0 0.0
    %1120 = vmatprep.subr.mxu0 0.0
    %1121 = vmatpush1.msra.mxu0 0.0
    %1122 = vmatprep.subr.mxu0 0.0
    %1123 = vmatpush1.msra.mxu0 0.0
    %1124 = vmatprep.subr.mxu0 0.0
    %1125 = vmatpush1.msra.mxu0 0.0
    %1126 = vmatprep.subr.mxu0 0.0
    %1127 = vmatpush1.msra.mxu0 %v1101
    %1128 = vmatprep.subr.mxu0 0.0
    %1129 = vmatpush1.msra.mxu0 %v1100
    %1130 = vmatprep.subr.mxu0 0.0
    %1131 = vmatpush1.msra.mxu0 %v1099
    %1132 = vmatprep.subr.mxu0 0.0
    %1133 = vmatpush1.msra.mxu0 %v1098
    %1134 = vmatprep.subr.mxu0 0.0
    %1135 = vmatpush2.msra.mxu0 0.0
    %1136 = vmatprep.subr.mxu0 0.0
    %1137 = vmatpush2.msra.mxu0 0.0
    %1138 = vmatprep.subr.mxu0 0.0
    %1139 = vmatpush2.msra.mxu0 0.0
    %1140 = vmatprep.subr.mxu0 0.0
    %1141 = vmatpush2.msra.mxu0 0.0
    %1142 = vmatprep.subr.mxu0 0.0
    %1143 = vmatpush2.msra.mxu0 0.0
    %1144 = vmatprep.subr.mxu0 0.0
    %1145 = vmatpush2.msra.mxu0 0.0
    %1146 = vmatprep.subr.mxu0 0.0
    %1147 = vmatpush2.msra.mxu0 0.0
    %1148 = vmatprep.subr.mxu0 0.0
    %1149 = vmatpush2.msra.mxu0 0.0
    %1150 = vmatprep.subr.mxu0 0.0
    %1151 = vmatpush2.msra.mxu0 0.0
    %1152 = vmatprep.subr.mxu0 0.0
    %1153 = vmatpush2.msra.mxu0 0.0
    %1154 = vmatprep.subr.mxu0 0.0
    %1155 = vmatpush2.msra.mxu0 0.0
    %1156 = vmatprep.subr.mxu0 0.0
    %1157 = vmatpush2.msra.mxu0 0.0
    %1158 = vmatprep.subr.mxu0 0.0
    %1159 = vmatpush2.msra.mxu0 0.0
    %1160 = vmatprep.subr.mxu0 0.0
    %1161 = vmatpush2.msra.mxu0 0.0
    %1162 = vmatprep.subr.mxu0 0.0
    %1163 = vmatpush2.msra.mxu0 0.0
    %1164 = vmatprep.subr.mxu0 0.0
    %1165 = vmatpush2.msra.mxu0 0.0
    %1166 = vmatprep.mubr.f32.mxu0 0.0
    %1167 = vmatmul.mubr.f32.gmra.mxu0 %v1023
    %v1168 = vpop.f32.mrf.mxu0
    %v1169 = vadd.f32 0.0, %v1168
    %v1170 = vpop.f32.mrf.mxu0
    %1171 = vdwg.mxu0
    %v1173 = vrot.slane %v1169, 4
    %v1175 = vadd.f32 %v145, %v1173
    %v1176 = vtanh.pop %v1175
    %v1177 = vld [vmem:[%s2] sm:$0xff]
    %v1178 = vld [vmem:[%s2 + $0x8] sm:$0xff]
    %v1179 = vld [vmem:[%s2 + $0x10] sm:$0xff]
    %v1180 = vld [vmem:[%s2 + $0x18] sm:$0xff]
    %v1181 = vld [vmem:[%s232] sm:$0xff]
    %v1182 = vld [vmem:[%s232 + $0x8] sm:$0xff]
    %v1183 = vld [vmem:[%s232 + $0x10] sm:$0xff]
    %v1184 = vld [vmem:[%s232 + $0x18] sm:$0xff]
    %v1186 = vsel %vm152, %v1096, 0
    %1188 = vmatprep.subr.mxu0 0.0
    %1189 = vmatpush1.msra.mxu0 0.0
    %1190 = vmatprep.subr.mxu0 0.0
    %1191 = vmatpush1.msra.mxu0 0.0
    %1192 = vmatprep.subr.mxu0 0.0
    %1193 = vmatpush1.msra.mxu0 0.0
    %1194 = vmatprep.subr.mxu0 0.0
    %1195 = vmatpush1.msra.mxu0 0.0
    %1196 = vmatprep.subr.mxu0 0.0
    %1197 = vmatpush1.msra.mxu0 0.0
    %1198 = vmatprep.subr.mxu0 0.0
    %1199 = vmatpush1.msra.mxu0 0.0
    %1200 = vmatprep.subr.mxu0 0.0
    %1201 = vmatpush1.msra.mxu0 0.0
    %1202 = vmatprep.subr.mxu0 0.0
    %1203 = vmatpush1.msra.mxu0 0.0
    %1204 = vmatprep.subr.mxu0 0.0
    %1205 = vmatpush1.msra.mxu0 0.0
    %1206 = vmatprep.subr.mxu0 0.0
    %1207 = vmatpush1.msra.mxu0 0.0
    %1208 = vmatprep.subr.mxu0 0.0
    %1209 = vmatpush1.msra.mxu0 0.0
    %1210 = vmatprep.subr.mxu0 0.0
    %1211 = vmatpush1.msra.mxu0 0.0
    %1212 = vmatprep.subr.mxu0 0.0
    %1213 = vmatpush1.msra.mxu0 %v1184
    %1214 = vmatprep.subr.mxu0 0.0
    %1215 = vmatpush1.msra.mxu0 %v1183
    %1216 = vmatprep.subr.mxu0 0.0
    %1217 = vmatpush1.msra.mxu0 %v1182
    %1218 = vmatprep.subr.mxu0 0.0
    %1219 = vmatpush1.msra.mxu0 %v1181
    %1220 = vmatprep.subr.mxu0 0.0
    %1221 = vmatpush2.msra.mxu0 0.0
    %1222 = vmatprep.subr.mxu0 0.0
    %1223 = vmatpush2.msra.mxu0 0.0
    %1224 = vmatprep.subr.mxu0 0.0
    %1225 = vmatpush2.msra.mxu0 0.0
    %1226 = vmatprep.subr.mxu0 0.0
    %1227 = vmatpush2.msra.mxu0 0.0
    %1228 = vmatprep.subr.mxu0 0.0
    %1229 = vmatpush2.msra.mxu0 0.0
    %1230 = vmatprep.subr.mxu0 0.0
    %1231 = vmatpush2.msra.mxu0 0.0
    %1232 = vmatprep.subr.mxu0 0.0
    %1233 = vmatpush2.msra.mxu0 0.0
    %1234 = vmatprep.subr.mxu0 0.0
    %1235 = vmatpush2.msra.mxu0 0.0
    %1236 = vmatprep.subr.mxu0 0.0
    %1237 = vmatpush2.msra.mxu0 0.0
    %1238 = vmatprep.subr.mxu0 0.0
    %1239 = vmatpush2.msra.mxu0 0.0
    %1240 = vmatprep.subr.mxu0 0.0
    %1241 = vmatpush2.msra.mxu0 0.0
    %1242 = vmatprep.subr.mxu0 0.0
    %1243 = vmatpush2.msra.mxu0 0.0
    %1244 = vmatprep.subr.mxu0 0.0
    %1245 = vmatpush2.msra.mxu0 0.0
    %1246 = vmatprep.subr.mxu0 0.0
    %1247 = vmatpush2.msra.mxu0 0.0
    %1248 = vmatprep.subr.mxu0 0.0
    %1249 = vmatpush2.msra.mxu0 0.0
    %1250 = vmatprep.subr.mxu0 0.0
    %1251 = vmatpush2.msra.mxu0 0.0
    %1252 = vmatprep.mubr.f32.mxu0 0.0
    %1253 = vmatmul.mubr.f32.gmra.mxu0 %v1186
    %v1254 = vpop.f32.mrf.mxu0
    %v1255 = vadd.f32 0.0, %v1254
    %v1256 = vpop.f32.mrf.mxu0
    %1257 = vdwg.mxu0
    %v1259 = vrot.slane %v1176, 4
    %v1260 = vsel %vm152, %v1259, 0
    %1262 = vmatprep.subr.mxu0 0.0
    %1263 = vmatpush1.msra.mxu0 0.0
    %1264 = vmatprep.subr.mxu0 0.0
    %1265 = vmatpush1.msra.mxu0 0.0
    %1266 = vmatprep.subr.mxu0 0.0
    %1267 = vmatpush1.msra.mxu0 0.0
    %1268 = vmatprep.subr.mxu0 0.0
    %1269 = vmatpush1.msra.mxu0 0.0
    %1270 = vmatprep.subr.mxu0 0.0
    %1271 = vmatpush1.msra.mxu0 0.0
    %1272 = vmatprep.subr.mxu0 0.0
    %1273 = vmatpush1.msra.mxu0 0.0
    %1274 = vmatprep.subr.mxu0 0.0
    %1275 = vmatpush1.msra.mxu0 0.0
    %1276 = vmatprep.subr.mxu0 0.0
    %1277 = vmatpush1.msra.mxu0 0.0
    %1278 = vmatprep.subr.mxu0 0.0
    %1279 = vmatpush1.msra.mxu0 0.0
    %1280 = vmatprep.subr.mxu0 0.0
    %1281 = vmatpush1.msra.mxu0 0.0
    %1282 = vmatprep.subr.mxu0 0.0
    %1283 = vmatpush1.msra.mxu0 0.0
    %1284 = vmatprep.subr.mxu0 0.0
    %1285 = vmatpush1.msra.mxu0 0.0
    %1286 = vmatprep.subr.mxu0 0.0
    %1287 = vmatpush1.msra.mxu0 %v1180
    %1288 = vmatprep.subr.mxu0 0.0
    %1289 = vmatpush1.msra.mxu0 %v1179
    %1290 = vmatprep.subr.mxu0 0.0
    %1291 = vmatpush1.msra.mxu0 %v1178
    %1292 = vmatprep.subr.mxu0 0.0
    %1293 = vmatpush1.msra.mxu0 %v1177
    %1294 = vmatprep.subr.mxu0 0.0
    %1295 = vmatpush2.msra.mxu0 0.0
    %1296 = vmatprep.subr.mxu0 0.0
    %1297 = vmatpush2.msra.mxu0 0.0
    %1298 = vmatprep.subr.mxu0 0.0
    %1299 = vmatpush2.msra.mxu0 0.0
    %1300 = vmatprep.subr.mxu0 0.0
    %1301 = vmatpush2.msra.mxu0 0.0
    %1302 = vmatprep.subr.mxu0 0.0
    %1303 = vmatpush2.msra.mxu0 0.0
    %1304 = vmatprep.subr.mxu0 0.0
    %1305 = vmatpush2.msra.mxu0 0.0
    %1306 = vmatprep.subr.mxu0 0.0
    %1307 = vmatpush2.msra.mxu0 0.0
    %1308 = vmatprep.subr.mxu0 0.0
    %1309 = vmatpush2.msra.mxu0 0.0
    %1310 = vmatprep.subr.mxu0 0.0
    %1311 = vmatpush2.msra.mxu0 0.0
    %1312 = vmatprep.subr.mxu0 0.0
    %1313 = vmatpush2.msra.mxu0 0.0
    %1314 = vmatprep.subr.mxu0 0.0
    %1315 = vmatpush2.msra.mxu0 0.0
    %1316 = vmatprep.subr.mxu0 0.0
    %1317 = vmatpush2.msra.mxu0 0.0
    %1318 = vmatprep.subr.mxu0 0.0
    %1319 = vmatpush2.msra.mxu0 0.0
    %1320 = vmatprep.subr.mxu0 0.0
    %1321 = vmatpush2.msra.mxu0 0.0
    %1322 = vmatprep.subr.mxu0 0.0
    %1323 = vmatpush2.msra.mxu0 0.0
    %1324 = vmatprep.subr.mxu0 0.0
    %1325 = vmatpush2.msra.mxu0 0.0
    %1326 = vmatprep.mubr.f32.mxu0 0.0
    %1327 = vmatmul.mubr.f32.gmra.mxu0 %v1260
    %v1328 = vpop.f32.mrf.mxu0
    %v1329 = vadd.f32 %v1255, %v1328
    %v1330 = vpop.f32.mrf.mxu0
    %1331 = vdwg.mxu0
    %v1332 = vadd.f32 %v1329, %v381
    %v1333 = vtanh.pop %v1332
    %1334 = vst.msk [vmem:[#allocation2 + $0x4] sm:$0x1] %vm385, %v1333
    %v1335 = vld [vmem:[#allocation6] sm:$0xff]
    %v1336 = vld [vmem:[#allocation6 + $0x8] sm:$0xff]
    %v1337 = vld [vmem:[#allocation6 + $0x10] sm:$0xff]
    %v1338 = vld [vmem:[#allocation6 + $0x18] sm:$0xff]
    %1339 = vmatprep.subr.mxu0 0.0
    %1340 = vmatpush1.msra.mxu0 0.0
    %1341 = vmatprep.subr.mxu0 0.0
    %1342 = vmatpush1.msra.mxu0 0.0
    %1343 = vmatprep.subr.mxu0 0.0
    %1344 = vmatpush1.msra.mxu0 0.0
    %1345 = vmatprep.subr.mxu0 0.0
    %1346 = vmatpush1.msra.mxu0 0.0
    %1347 = vmatprep.subr.mxu0 0.0
    %1348 = vmatpush1.msra.mxu0 0.0
    %1349 = vmatprep.subr.mxu0 0.0
    %1350 = vmatpush1.msra.mxu0 0.0
    %1351 = vmatprep.subr.mxu0 0.0
    %1352 = vmatpush1.msra.mxu0 0.0
    %1353 = vmatprep.subr.mxu0 0.0
    %1354 = vmatpush1.msra.mxu0 0.0
    %1355 = vmatprep.subr.mxu0 0.0
    %1356 = vmatpush1.msra.mxu0 0.0
    %1357 = vmatprep.subr.mxu0 0.0
    %1358 = vmatpush1.msra.mxu0 0.0
    %1359 = vmatprep.subr.mxu0 0.0
    %1360 = vmatpush1.msra.mxu0 0.0
    %1361 = vmatprep.subr.mxu0 0.0
    %1362 = vmatpush1.msra.mxu0 0.0
    %1363 = vmatprep.subr.mxu0 0.0
    %1364 = vmatpush1.msra.mxu0 %v1338
    %1365 = vmatprep.subr.mxu0 0.0
    %1366 = vmatpush1.msra.mxu0 %v1337
    %1367 = vmatprep.subr.mxu0 0.0
    %1368 = vmatpush1.msra.mxu0 %v1336
    %1369 = vmatprep.subr.mxu0 0.0
    %1370 = vmatpush1.msra.mxu0 %v1335
    %1371 = vmatprep.subr.mxu0 0.0
    %1372 = vmatpush2.msra.mxu0 0.0
    %1373 = vmatprep.subr.mxu0 0.0
    %1374 = vmatpush2.msra.mxu0 0.0
    %1375 = vmatprep.subr.mxu0 0.0
    %1376 = vmatpush2.msra.mxu0 0.0
    %1377 = vmatprep.subr.mxu0 0.0
    %1378 = vmatpush2.msra.mxu0 0.0
    %1379 = vmatprep.subr.mxu0 0.0
    %1380 = vmatpush2.msra.mxu0 0.0
    %1381 = vmatprep.subr.mxu0 0.0
    %1382 = vmatpush2.msra.mxu0 0.0
    %1383 = vmatprep.subr.mxu0 0.0
    %1384 = vmatpush2.msra.mxu0 0.0
    %1385 = vmatprep.subr.mxu0 0.0
    %1386 = vmatpush2.msra.mxu0 0.0
    %1387 = vmatprep.subr.mxu0 0.0
    %1388 = vmatpush2.msra.mxu0 0.0
    %1389 = vmatprep.subr.mxu0 0.0
    %1390 = vmatpush2.msra.mxu0 0.0
    %1391 = vmatprep.subr.mxu0 0.0
    %1392 = vmatpush2.msra.mxu0 0.0
    %1393 = vmatprep.subr.mxu0 0.0
    %1394 = vmatpush2.msra.mxu0 0.0
    %1395 = vmatprep.subr.mxu0 0.0
    %1396 = vmatpush2.msra.mxu0 0.0
    %1397 = vmatprep.subr.mxu0 0.0
    %1398 = vmatpush2.msra.mxu0 0.0
    %1399 = vmatprep.subr.mxu0 0.0
    %1400 = vmatpush2.msra.mxu0 0.0
    %1401 = vmatprep.subr.mxu0 0.0
    %1402 = vmatpush2.msra.mxu0 0.0
    %1403 = vmatprep.mubr.f32.mxu0 0.0
    %1404 = vmatmul.mubr.f32.gmra.mxu0 %v1260
    %v1405 = vpop.f32.mrf.mxu0
    %v1406 = vadd.f32 0.0, %v1405
    %v1407 = vpop.f32.mrf.mxu0
    %1408 = vdwg.mxu0
    %v1410 = vrot.slane %v1406, 3
    %v1412 = vadd.f32 %v145, %v1410
    %v1413 = vtanh.pop %v1412
    %v1414 = vld [vmem:[%s2] sm:$0xff]
    %v1415 = vld [vmem:[%s2 + $0x8] sm:$0xff]
    %v1416 = vld [vmem:[%s2 + $0x10] sm:$0xff]
    %v1417 = vld [vmem:[%s2 + $0x18] sm:$0xff]
    %v1418 = vld [vmem:[%s232] sm:$0xff]
    %v1419 = vld [vmem:[%s232 + $0x8] sm:$0xff]
    %v1420 = vld [vmem:[%s232 + $0x10] sm:$0xff]
    %v1421 = vld [vmem:[%s232 + $0x18] sm:$0xff]
    %v1423 = vsel %vm152, %v1333, 0
    %1425 = vmatprep.subr.mxu0 0.0
    %1426 = vmatpush1.msra.mxu0 0.0
    %1427 = vmatprep.subr.mxu0 0.0
    %1428 = vmatpush1.msra.mxu0 0.0
    %1429 = vmatprep.subr.mxu0 0.0
    %1430 = vmatpush1.msra.mxu0 0.0
    %1431 = vmatprep.subr.mxu0 0.0
    %1432 = vmatpush1.msra.mxu0 0.0
    %1433 = vmatprep.subr.mxu0 0.0
    %1434 = vmatpush1.msra.mxu0 0.0
    %1435 = vmatprep.subr.mxu0 0.0
    %1436 = vmatpush1.msra.mxu0 0.0
    %1437 = vmatprep.subr.mxu0 0.0
    %1438 = vmatpush1.msra.mxu0 0.0
    %1439 = vmatprep.subr.mxu0 0.0
    %1440 = vmatpush1.msra.mxu0 0.0
    %1441 = vmatprep.subr.mxu0 0.0
    %1442 = vmatpush1.msra.mxu0 0.0
    %1443 = vmatprep.subr.mxu0 0.0
    %1444 = vmatpush1.msra.mxu0 0.0
    %1445 = vmatprep.subr.mxu0 0.0
    %1446 = vmatpush1.msra.mxu0 0.0
    %1447 = vmatprep.subr.mxu0 0.0
    %1448 = vmatpush1.msra.mxu0 0.0
    %1449 = vmatprep.subr.mxu0 0.0
    %1450 = vmatpush1.msra.mxu0 %v1421
    %1451 = vmatprep.subr.mxu0 0.0
    %1452 = vmatpush1.msra.mxu0 %v1420
    %1453 = vmatprep.subr.mxu0 0.0
    %1454 = vmatpush1.msra.mxu0 %v1419
    %1455 = vmatprep.subr.mxu0 0.0
    %1456 = vmatpush1.msra.mxu0 %v1418
    %1457 = vmatprep.subr.mxu0 0.0
    %1458 = vmatpush2.msra.mxu0 0.0
    %1459 = vmatprep.subr.mxu0 0.0
    %1460 = vmatpush2.msra.mxu0 0.0
    %1461 = vmatprep.subr.mxu0 0.0
    %1462 = vmatpush2.msra.mxu0 0.0
    %1463 = vmatprep.subr.mxu0 0.0
    %1464 = vmatpush2.msra.mxu0 0.0
    %1465 = vmatprep.subr.mxu0 0.0
    %1466 = vmatpush2.msra.mxu0 0.0
    %1467 = vmatprep.subr.mxu0 0.0
    %1468 = vmatpush2.msra.mxu0 0.0
    %1469 = vmatprep.subr.mxu0 0.0
    %1470 = vmatpush2.msra.mxu0 0.0
    %1471 = vmatprep.subr.mxu0 0.0
    %1472 = vmatpush2.msra.mxu0 0.0
    %1473 = vmatprep.subr.mxu0 0.0
    %1474 = vmatpush2.msra.mxu0 0.0
    %1475 = vmatprep.subr.mxu0 0.0
    %1476 = vmatpush2.msra.mxu0 0.0
    %1477 = vmatprep.subr.mxu0 0.0
    %1478 = vmatpush2.msra.mxu0 0.0
    %1479 = vmatprep.subr.mxu0 0.0
    %1480 = vmatpush2.msra.mxu0 0.0
    %1481 = vmatprep.subr.mxu0 0.0
    %1482 = vmatpush2.msra.mxu0 0.0
    %1483 = vmatprep.subr.mxu0 0.0
    %1484 = vmatpush2.msra.mxu0 0.0
    %1485 = vmatprep.subr.mxu0 0.0
    %1486 = vmatpush2.msra.mxu0 0.0
    %1487 = vmatprep.subr.mxu0 0.0
    %1488 = vmatpush2.msra.mxu0 0.0
    %1489 = vmatprep.mubr.f32.mxu0 0.0
    %1490 = vmatmul.mubr.f32.gmra.mxu0 %v1423
    %v1491 = vpop.f32.mrf.mxu0
    %v1492 = vadd.f32 0.0, %v1491
    %v1493 = vpop.f32.mrf.mxu0
    %1494 = vdwg.mxu0
    %v1496 = vrot.slane %v1413, 5
    %v1497 = vsel %vm152, %v1496, 0
    %1499 = vmatprep.subr.mxu0 0.0
    %1500 = vmatpush1.msra.mxu0 0.0
    %1501 = vmatprep.subr.mxu0 0.0
    %1502 = vmatpush1.msra.mxu0 0.0
    %1503 = vmatprep.subr.mxu0 0.0
    %1504 = vmatpush1.msra.mxu0 0.0
    %1505 = vmatprep.subr.mxu0 0.0
    %1506 = vmatpush1.msra.mxu0 0.0
    %1507 = vmatprep.subr.mxu0 0.0
    %1508 = vmatpush1.msra.mxu0 0.0
    %1509 = vmatprep.subr.mxu0 0.0
    %1510 = vmatpush1.msra.mxu0 0.0
    %1511 = vmatprep.subr.mxu0 0.0
    %1512 = vmatpush1.msra.mxu0 0.0
    %1513 = vmatprep.subr.mxu0 0.0
    %1514 = vmatpush1.msra.mxu0 0.0
    %1515 = vmatprep.subr.mxu0 0.0
    %1516 = vmatpush1.msra.mxu0 0.0
    %1517 = vmatprep.subr.mxu0 0.0
    %1518 = vmatpush1.msra.mxu0 0.0
    %1519 = vmatprep.subr.mxu0 0.0
    %1520 = vmatpush1.msra.mxu0 0.0
    %1521 = vmatprep.subr.mxu0 0.0
    %1522 = vmatpush1.msra.mxu0 0.0
    %1523 = vmatprep.subr.mxu0 0.0
    %1524 = vmatpush1.msra.mxu0 %v1417
    %1525 = vmatprep.subr.mxu0 0.0
    %1526 = vmatpush1.msra.mxu0 %v1416
    %1527 = vmatprep.subr.mxu0 0.0
    %1528 = vmatpush1.msra.mxu0 %v1415
    %1529 = vmatprep.subr.mxu0 0.0
    %1530 = vmatpush1.msra.mxu0 %v1414
    %1531 = vmatprep.subr.mxu0 0.0
    %1532 = vmatpush2.msra.mxu0 0.0
    %1533 = vmatprep.subr.mxu0 0.0
    %1534 = vmatpush2.msra.mxu0 0.0
    %1535 = vmatprep.subr.mxu0 0.0
    %1536 = vmatpush2.msra.mxu0 0.0
    %1537 = vmatprep.subr.mxu0 0.0
    %1538 = vmatpush2.msra.mxu0 0.0
    %1539 = vmatprep.subr.mxu0 0.0
    %1540 = vmatpush2.msra.mxu0 0.0
    %1541 = vmatprep.subr.mxu0 0.0
    %1542 = vmatpush2.msra.mxu0 0.0
    %1543 = vmatprep.subr.mxu0 0.0
    %1544 = vmatpush2.msra.mxu0 0.0
    %1545 = vmatprep.subr.mxu0 0.0
    %1546 = vmatpush2.msra.mxu0 0.0
    %1547 = vmatprep.subr.mxu0 0.0
    %1548 = vmatpush2.msra.mxu0 0.0
    %1549 = vmatprep.subr.mxu0 0.0
    %1550 = vmatpush2.msra.mxu0 0.0
    %1551 = vmatprep.subr.mxu0 0.0
    %1552 = vmatpush2.msra.mxu0 0.0
    %1553 = vmatprep.subr.mxu0 0.0
    %1554 = vmatpush2.msra.mxu0 0.0
    %1555 = vmatprep.subr.mxu0 0.0
    %1556 = vmatpush2.msra.mxu0 0.0
    %1557 = vmatprep.subr.mxu0 0.0
    %1558 = vmatpush2.msra.mxu0 0.0
    %1559 = vmatprep.subr.mxu0 0.0
    %1560 = vmatpush2.msra.mxu0 0.0
    %1561 = vmatprep.subr.mxu0 0.0
    %1562 = vmatpush2.msra.mxu0 0.0
    %1563 = vmatprep.mubr.f32.mxu0 0.0
    %1564 = vmatmul.mubr.f32.gmra.mxu0 %v1497
    %v1565 = vpop.f32.mrf.mxu0
    %v1566 = vadd.f32 %v1492, %v1565
    %v1567 = vpop.f32.mrf.mxu0
    %1568 = vdwg.mxu0
    %v1569 = vadd.f32 %v1566, %v381
    %v1570 = vtanh.pop %v1569
    %1571 = vst.msk [vmem:[#allocation2 + $0x5] sm:$0x1] %vm385, %v1570
    %v1572 = vld [vmem:[#allocation6] sm:$0xff]
    %v1573 = vld [vmem:[#allocation6 + $0x8] sm:$0xff]
    %v1574 = vld [vmem:[#allocation6 + $0x10] sm:$0xff]
    %v1575 = vld [vmem:[#allocation6 + $0x18] sm:$0xff]
    %1576 = vmatprep.subr.mxu0 0.0
    %1577 = vmatpush1.msra.mxu0 0.0
    %1578 = vmatprep.subr.mxu0 0.0
    %1579 = vmatpush1.msra.mxu0 0.0
    %1580 = vmatprep.subr.mxu0 0.0
    %1581 = vmatpush1.msra.mxu0 0.0
    %1582 = vmatprep.subr.mxu0 0.0
    %1583 = vmatpush1.msra.mxu0 0.0
    %1584 = vmatprep.subr.mxu0 0.0
    %1585 = vmatpush1.msra.mxu0 0.0
    %1586 = vmatprep.subr.mxu0 0.0
    %1587 = vmatpush1.msra.mxu0 0.0
    %1588 = vmatprep.subr.mxu0 0.0
    %1589 = vmatpush1.msra.mxu0 0.0
    %1590 = vmatprep.subr.mxu0 0.0
    %1591 = vmatpush1.msra.mxu0 0.0
    %1592 = vmatprep.subr.mxu0 0.0
    %1593 = vmatpush1.msra.mxu0 0.0
    %1594 = vmatprep.subr.mxu0 0.0
    %1595 = vmatpush1.msra.mxu0 0.0
    %1596 = vmatprep.subr.mxu0 0.0
    %1597 = vmatpush1.msra.mxu0 0.0
    %1598 = vmatprep.subr.mxu0 0.0
    %1599 = vmatpush1.msra.mxu0 0.0
    %1600 = vmatprep.subr.mxu0 0.0
    %1601 = vmatpush1.msra.mxu0 %v1575
    %1602 = vmatprep.subr.mxu0 0.0
    %1603 = vmatpush1.msra.mxu0 %v1574
    %1604 = vmatprep.subr.mxu0 0.0
    %1605 = vmatpush1.msra.mxu0 %v1573
    %1606 = vmatprep.subr.mxu0 0.0
    %1607 = vmatpush1.msra.mxu0 %v1572
    %1608 = vmatprep.subr.mxu0 0.0
    %1609 = vmatpush2.msra.mxu0 0.0
    %1610 = vmatprep.subr.mxu0 0.0
    %1611 = vmatpush2.msra.mxu0 0.0
    %1612 = vmatprep.subr.mxu0 0.0
    %1613 = vmatpush2.msra.mxu0 0.0
    %1614 = vmatprep.subr.mxu0 0.0
    %1615 = vmatpush2.msra.mxu0 0.0
    %1616 = vmatprep.subr.mxu0 0.0
    %1617 = vmatpush2.msra.mxu0 0.0
    %1618 = vmatprep.subr.mxu0 0.0
    %1619 = vmatpush2.msra.mxu0 0.0
    %1620 = vmatprep.subr.mxu0 0.0
    %1621 = vmatpush2.msra.mxu0 0.0
    %1622 = vmatprep.subr.mxu0 0.0
    %1623 = vmatpush2.msra.mxu0 0.0
    %1624 = vmatprep.subr.mxu0 0.0
    %1625 = vmatpush2.msra.mxu0 0.0
    %1626 = vmatprep.subr.mxu0 0.0
    %1627 = vmatpush2.msra.mxu0 0.0
    %1628 = vmatprep.subr.mxu0 0.0
    %1629 = vmatpush2.msra.mxu0 0.0
    %1630 = vmatprep.subr.mxu0 0.0
    %1631 = vmatpush2.msra.mxu0 0.0
    %1632 = vmatprep.subr.mxu0 0.0
    %1633 = vmatpush2.msra.mxu0 0.0
    %1634 = vmatprep.subr.mxu0 0.0
    %1635 = vmatpush2.msra.mxu0 0.0
    %1636 = vmatprep.subr.mxu0 0.0
    %1637 = vmatpush2.msra.mxu0 0.0
    %1638 = vmatprep.subr.mxu0 0.0
    %1639 = vmatpush2.msra.mxu0 0.0
    %1640 = vmatprep.mubr.f32.mxu0 0.0
    %1641 = vmatmul.mubr.f32.gmra.mxu0 %v1497
    %v1642 = vpop.f32.mrf.mxu0
    %v1643 = vadd.f32 0.0, %v1642
    %v1644 = vpop.f32.mrf.mxu0
    %1645 = vdwg.mxu0
    %v1647 = vrot.slane %v1643, 2
    %v1649 = vadd.f32 %v145, %v1647
    %v1650 = vtanh.pop %v1649
    %v1651 = vld [vmem:[%s2] sm:$0xff]
    %v1652 = vld [vmem:[%s2 + $0x8] sm:$0xff]
    %v1653 = vld [vmem:[%s2 + $0x10] sm:$0xff]
    %v1654 = vld [vmem:[%s2 + $0x18] sm:$0xff]
    %v1655 = vld [vmem:[%s232] sm:$0xff]
    %v1656 = vld [vmem:[%s232 + $0x8] sm:$0xff]
    %v1657 = vld [vmem:[%s232 + $0x10] sm:$0xff]
    %v1658 = vld [vmem:[%s232 + $0x18] sm:$0xff]
    %v1660 = vsel %vm152, %v1570, 0
    %1662 = vmatprep.subr.mxu0 0.0
    %1663 = vmatpush1.msra.mxu0 0.0
    %1664 = vmatprep.subr.mxu0 0.0
    %1665 = vmatpush1.msra.mxu0 0.0
    %1666 = vmatprep.subr.mxu0 0.0
    %1667 = vmatpush1.msra.mxu0 0.0
    %1668 = vmatprep.subr.mxu0 0.0
    %1669 = vmatpush1.msra.mxu0 0.0
    %1670 = vmatprep.subr.mxu0 0.0
    %1671 = vmatpush1.msra.mxu0 0.0
    %1672 = vmatprep.subr.mxu0 0.0
    %1673 = vmatpush1.msra.mxu0 0.0
    %1674 = vmatprep.subr.mxu0 0.0
    %1675 = vmatpush1.msra.mxu0 0.0
    %1676 = vmatprep.subr.mxu0 0.0
    %1677 = vmatpush1.msra.mxu0 0.0
    %1678 = vmatprep.subr.mxu0 0.0
    %1679 = vmatpush1.msra.mxu0 0.0
    %1680 = vmatprep.subr.mxu0 0.0
    %1681 = vmatpush1.msra.mxu0 0.0
    %1682 = vmatprep.subr.mxu0 0.0
    %1683 = vmatpush1.msra.mxu0 0.0
    %1684 = vmatprep.subr.mxu0 0.0
    %1685 = vmatpush1.msra.mxu0 0.0
    %1686 = vmatprep.subr.mxu0 0.0
    %1687 = vmatpush1.msra.mxu0 %v1658
    %1688 = vmatprep.subr.mxu0 0.0
    %1689 = vmatpush1.msra.mxu0 %v1657
    %1690 = vmatprep.subr.mxu0 0.0
    %1691 = vmatpush1.msra.mxu0 %v1656
    %1692 = vmatprep.subr.mxu0 0.0
    %1693 = vmatpush1.msra.mxu0 %v1655
    %1694 = vmatprep.subr.mxu0 0.0
    %1695 = vmatpush2.msra.mxu0 0.0
    %1696 = vmatprep.subr.mxu0 0.0
    %1697 = vmatpush2.msra.mxu0 0.0
    %1698 = vmatprep.subr.mxu0 0.0
    %1699 = vmatpush2.msra.mxu0 0.0
    %1700 = vmatprep.subr.mxu0 0.0
    %1701 = vmatpush2.msra.mxu0 0.0
    %1702 = vmatprep.subr.mxu0 0.0
    %1703 = vmatpush2.msra.mxu0 0.0
    %1704 = vmatprep.subr.mxu0 0.0
    %1705 = vmatpush2.msra.mxu0 0.0
    %1706 = vmatprep.subr.mxu0 0.0
    %1707 = vmatpush2.msra.mxu0 0.0
    %1708 = vmatprep.subr.mxu0 0.0
    %1709 = vmatpush2.msra.mxu0 0.0
    %1710 = vmatprep.subr.mxu0 0.0
    %1711 = vmatpush2.msra.mxu0 0.0
    %1712 = vmatprep.subr.mxu0 0.0
    %1713 = vmatpush2.msra.mxu0 0.0
    %1714 = vmatprep.subr.mxu0 0.0
    %1715 = vmatpush2.msra.mxu0 0.0
    %1716 = vmatprep.subr.mxu0 0.0
    %1717 = vmatpush2.msra.mxu0 0.0
    %1718 = vmatprep.subr.mxu0 0.0
    %1719 = vmatpush2.msra.mxu0 0.0
    %1720 = vmatprep.subr.mxu0 0.0
    %1721 = vmatpush2.msra.mxu0 0.0
    %1722 = vmatprep.subr.mxu0 0.0
    %1723 = vmatpush2.msra.mxu0 0.0
    %1724 = vmatprep.subr.mxu0 0.0
    %1725 = vmatpush2.msra.mxu0 0.0
    %1726 = vmatprep.mubr.f32.mxu0 0.0
    %1727 = vmatmul.mubr.f32.gmra.mxu0 %v1660
    %v1728 = vpop.f32.mrf.mxu0
    %v1729 = vadd.f32 0.0, %v1728
    %v1730 = vpop.f32.mrf.mxu0
    %1731 = vdwg.mxu0
    %v1733 = vrot.slane %v1650, 6
    %v1734 = vsel %vm152, %v1733, 0
    %1736 = vmatprep.subr.mxu0 0.0
    %1737 = vmatpush1.msra.mxu0 0.0
    %1738 = vmatprep.subr.mxu0 0.0
    %1739 = vmatpush1.msra.mxu0 0.0
    %1740 = vmatprep.subr.mxu0 0.0
    %1741 = vmatpush1.msra.mxu0 0.0
    %1742 = vmatprep.subr.mxu0 0.0
    %1743 = vmatpush1.msra.mxu0 0.0
    %1744 = vmatprep.subr.mxu0 0.0
    %1745 = vmatpush1.msra.mxu0 0.0
    %1746 = vmatprep.subr.mxu0 0.0
    %1747 = vmatpush1.msra.mxu0 0.0
    %1748 = vmatprep.subr.mxu0 0.0
    %1749 = vmatpush1.msra.mxu0 0.0
    %1750 = vmatprep.subr.mxu0 0.0
    %1751 = vmatpush1.msra.mxu0 0.0
    %1752 = vmatprep.subr.mxu0 0.0
    %1753 = vmatpush1.msra.mxu0 0.0
    %1754 = vmatprep.subr.mxu0 0.0
    %1755 = vmatpush1.msra.mxu0 0.0
    %1756 = vmatprep.subr.mxu0 0.0
    %1757 = vmatpush1.msra.mxu0 0.0
    %1758 = vmatprep.subr.mxu0 0.0
    %1759 = vmatpush1.msra.mxu0 0.0
    %1760 = vmatprep.subr.mxu0 0.0
    %1761 = vmatpush1.msra.mxu0 %v1654
    %1762 = vmatprep.subr.mxu0 0.0
    %1763 = vmatpush1.msra.mxu0 %v1653
    %1764 = vmatprep.subr.mxu0 0.0
    %1765 = vmatpush1.msra.mxu0 %v1652
    %1766 = vmatprep.subr.mxu0 0.0
    %1767 = vmatpush1.msra.mxu0 %v1651
    %1768 = vmatprep.subr.mxu0 0.0
    %1769 = vmatpush2.msra.mxu0 0.0
    %1770 = vmatprep.subr.mxu0 0.0
    %1771 = vmatpush2.msra.mxu0 0.0
    %1772 = vmatprep.subr.mxu0 0.0
    %1773 = vmatpush2.msra.mxu0 0.0
    %1774 = vmatprep.subr.mxu0 0.0
    %1775 = vmatpush2.msra.mxu0 0.0
    %1776 = vmatprep.subr.mxu0 0.0
    %1777 = vmatpush2.msra.mxu0 0.0
    %1778 = vmatprep.subr.mxu0 0.0
    %1779 = vmatpush2.msra.mxu0 0.0
    %1780 = vmatprep.subr.mxu0 0.0
    %1781 = vmatpush2.msra.mxu0 0.0
    %1782 = vmatprep.subr.mxu0 0.0
    %1783 = vmatpush2.msra.mxu0 0.0
    %1784 = vmatprep.subr.mxu0 0.0
    %1785 = vmatpush2.msra.mxu0 0.0
    %1786 = vmatprep.subr.mxu0 0.0
    %1787 = vmatpush2.msra.mxu0 0.0
    %1788 = vmatprep.subr.mxu0 0.0
    %1789 = vmatpush2.msra.mxu0 0.0
    %1790 = vmatprep.subr.mxu0 0.0
    %1791 = vmatpush2.msra.mxu0 0.0
    %1792 = vmatprep.subr.mxu0 0.0
    %1793 = vmatpush2.msra.mxu0 0.0
    %1794 = vmatprep.subr.mxu0 0.0
    %1795 = vmatpush2.msra.mxu0 0.0
    %1796 = vmatprep.subr.mxu0 0.0
    %1797 = vmatpush2.msra.mxu0 0.0
    %1798 = vmatprep.subr.mxu0 0.0
    %1799 = vmatpush2.msra.mxu0 0.0
    %1800 = vmatprep.mubr.f32.mxu0 0.0
    %1801 = vmatmul.mubr.f32.gmra.mxu0 %v1734
    %v1802 = vpop.f32.mrf.mxu0
    %v1803 = vadd.f32 %v1729, %v1802
    %v1804 = vpop.f32.mrf.mxu0
    %1805 = vdwg.mxu0
    %v1806 = vadd.f32 %v1803, %v381
    %v1807 = vtanh.pop %v1806
    %1808 = vst.msk [vmem:[#allocation2 + $0x6] sm:$0x1] %vm385, %v1807
    %v1809 = vld [vmem:[#allocation6] sm:$0xff]
    %v1810 = vld [vmem:[#allocation6 + $0x8] sm:$0xff]
    %v1811 = vld [vmem:[#allocation6 + $0x10] sm:$0xff]
    %v1812 = vld [vmem:[#allocation6 + $0x18] sm:$0xff]
    %1813 = vmatprep.subr.mxu0 0.0
    %1814 = vmatpush1.msra.mxu0 0.0
    %1815 = vmatprep.subr.mxu0 0.0
    %1816 = vmatpush1.msra.mxu0 0.0
    %1817 = vmatprep.subr.mxu0 0.0
    %1818 = vmatpush1.msra.mxu0 0.0
    %1819 = vmatprep.subr.mxu0 0.0
    %1820 = vmatpush1.msra.mxu0 0.0
    %1821 = vmatprep.subr.mxu0 0.0
    %1822 = vmatpush1.msra.mxu0 0.0
    %1823 = vmatprep.subr.mxu0 0.0
    %1824 = vmatpush1.msra.mxu0 0.0
    %1825 = vmatprep.subr.mxu0 0.0
    %1826 = vmatpush1.msra.mxu0 0.0
    %1827 = vmatprep.subr.mxu0 0.0
    %1828 = vmatpush1.msra.mxu0 0.0
    %1829 = vmatprep.subr.mxu0 0.0
    %1830 = vmatpush1.msra.mxu0 0.0
    %1831 = vmatprep.subr.mxu0 0.0
    %1832 = vmatpush1.msra.mxu0 0.0
    %1833 = vmatprep.subr.mxu0 0.0
    %1834 = vmatpush1.msra.mxu0 0.0
    %1835 = vmatprep.subr.mxu0 0.0
    %1836 = vmatpush1.msra.mxu0 0.0
    %1837 = vmatprep.subr.mxu0 0.0
    %1838 = vmatpush1.msra.mxu0 %v1812
    %1839 = vmatprep.subr.mxu0 0.0
    %1840 = vmatpush1.msra.mxu0 %v1811
    %1841 = vmatprep.subr.mxu0 0.0
    %1842 = vmatpush1.msra.mxu0 %v1810
    %1843 = vmatprep.subr.mxu0 0.0
    %1844 = vmatpush1.msra.mxu0 %v1809
    %1845 = vmatprep.subr.mxu0 0.0
    %1846 = vmatpush2.msra.mxu0 0.0
    %1847 = vmatprep.subr.mxu0 0.0
    %1848 = vmatpush2.msra.mxu0 0.0
    %1849 = vmatprep.subr.mxu0 0.0
    %1850 = vmatpush2.msra.mxu0 0.0
    %1851 = vmatprep.subr.mxu0 0.0
    %1852 = vmatpush2.msra.mxu0 0.0
    %1853 = vmatprep.subr.mxu0 0.0
    %1854 = vmatpush2.msra.mxu0 0.0
    %1855 = vmatprep.subr.mxu0 0.0
    %1856 = vmatpush2.msra.mxu0 0.0
    %1857 = vmatprep.subr.mxu0 0.0
    %1858 = vmatpush2.msra.mxu0 0.0
    %1859 = vmatprep.subr.mxu0 0.0
    %1860 = vmatpush2.msra.mxu0 0.0
    %1861 = vmatprep.subr.mxu0 0.0
    %1862 = vmatpush2.msra.mxu0 0.0
    %1863 = vmatprep.subr.mxu0 0.0
    %1864 = vmatpush2.msra.mxu0 0.0
    %1865 = vmatprep.subr.mxu0 0.0
    %1866 = vmatpush2.msra.mxu0 0.0
    %1867 = vmatprep.subr.mxu0 0.0
    %1868 = vmatpush2.msra.mxu0 0.0
    %1869 = vmatprep.subr.mxu0 0.0
    %1870 = vmatpush2.msra.mxu0 0.0
    %1871 = vmatprep.subr.mxu0 0.0
    %1872 = vmatpush2.msra.mxu0 0.0
    %1873 = vmatprep.subr.mxu0 0.0
    %1874 = vmatpush2.msra.mxu0 0.0
    %1875 = vmatprep.subr.mxu0 0.0
    %1876 = vmatpush2.msra.mxu0 0.0
    %1877 = vmatprep.mubr.f32.mxu0 0.0
    %1878 = vmatmul.mubr.f32.gmra.mxu0 %v1734
    %v1879 = vpop.f32.mrf.mxu0
    %v1880 = vadd.f32 0.0, %v1879
    %v1881 = vpop.f32.mrf.mxu0
    %1882 = vdwg.mxu0
    %v1884 = vrot.slane %v1880, 1
    %v1886 = vadd.f32 %v145, %v1884
    %v1887 = vtanh.pop %v1886
    %v1888 = vld [vmem:[%s2] sm:$0xff]
    %v1889 = vld [vmem:[%s2 + $0x8] sm:$0xff]
    %v1890 = vld [vmem:[%s2 + $0x10] sm:$0xff]
    %v1891 = vld [vmem:[%s2 + $0x18] sm:$0xff]
    %v1892 = vld [vmem:[%s232] sm:$0xff]
    %v1893 = vld [vmem:[%s232 + $0x8] sm:$0xff]
    %v1894 = vld [vmem:[%s232 + $0x10] sm:$0xff]
    %v1895 = vld [vmem:[%s232 + $0x18] sm:$0xff]
    %v1897 = vsel %vm152, %v1807, 0
    %1899 = vmatprep.subr.mxu0 0.0
    %1900 = vmatpush1.msra.mxu0 0.0
    %1901 = vmatprep.subr.mxu0 0.0
    %1902 = vmatpush1.msra.mxu0 0.0
    %1903 = vmatprep.subr.mxu0 0.0
    %1904 = vmatpush1.msra.mxu0 0.0
    %1905 = vmatprep.subr.mxu0 0.0
    %1906 = vmatpush1.msra.mxu0 0.0
    %1907 = vmatprep.subr.mxu0 0.0
    %1908 = vmatpush1.msra.mxu0 0.0
    %1909 = vmatprep.subr.mxu0 0.0
    %1910 = vmatpush1.msra.mxu0 0.0
    %1911 = vmatprep.subr.mxu0 0.0
    %1912 = vmatpush1.msra.mxu0 0.0
    %1913 = vmatprep.subr.mxu0 0.0
    %1914 = vmatpush1.msra.mxu0 0.0
    %1915 = vmatprep.subr.mxu0 0.0
    %1916 = vmatpush1.msra.mxu0 0.0
    %1917 = vmatprep.subr.mxu0 0.0
    %1918 = vmatpush1.msra.mxu0 0.0
    %1919 = vmatprep.subr.mxu0 0.0
    %1920 = vmatpush1.msra.mxu0 0.0
    %1921 = vmatprep.subr.mxu0 0.0
    %1922 = vmatpush1.msra.mxu0 0.0
    %1923 = vmatprep.subr.mxu0 0.0
    %1924 = vmatpush1.msra.mxu0 %v1895
    %1925 = vmatprep.subr.mxu0 0.0
    %1926 = vmatpush1.msra.mxu0 %v1894
    %1927 = vmatprep.subr.mxu0 0.0
    %1928 = vmatpush1.msra.mxu0 %v1893
    %1929 = vmatprep.subr.mxu0 0.0
    %1930 = vmatpush1.msra.mxu0 %v1892
    %1931 = vmatprep.subr.mxu0 0.0
    %1932 = vmatpush2.msra.mxu0 0.0
    %1933 = vmatprep.subr.mxu0 0.0
    %1934 = vmatpush2.msra.mxu0 0.0
    %1935 = vmatprep.subr.mxu0 0.0
    %1936 = vmatpush2.msra.mxu0 0.0
    %1937 = vmatprep.subr.mxu0 0.0
    %1938 = vmatpush2.msra.mxu0 0.0
    %1939 = vmatprep.subr.mxu0 0.0
    %1940 = vmatpush2.msra.mxu0 0.0
    %1941 = vmatprep.subr.mxu0 0.0
    %1942 = vmatpush2.msra.mxu0 0.0
    %1943 = vmatprep.subr.mxu0 0.0
    %1944 = vmatpush2.msra.mxu0 0.0
    %1945 = vmatprep.subr.mxu0 0.0
    %1946 = vmatpush2.msra.mxu0 0.0
    %1947 = vmatprep.subr.mxu0 0.0
    %1948 = vmatpush2.msra.mxu0 0.0
    %1949 = vmatprep.subr.mxu0 0.0
    %1950 = vmatpush2.msra.mxu0 0.0
    %1951 = vmatprep.subr.mxu0 0.0
    %1952 = vmatpush2.msra.mxu0 0.0
    %1953 = vmatprep.subr.mxu0 0.0
    %1954 = vmatpush2.msra.mxu0 0.0
    %1955 = vmatprep.subr.mxu0 0.0
    %1956 = vmatpush2.msra.mxu0 0.0
    %1957 = vmatprep.subr.mxu0 0.0
    %1958 = vmatpush2.msra.mxu0 0.0
    %1959 = vmatprep.subr.mxu0 0.0
    %1960 = vmatpush2.msra.mxu0 0.0
    %1961 = vmatprep.subr.mxu0 0.0
    %1962 = vmatpush2.msra.mxu0 0.0
    %1963 = vmatprep.mubr.f32.mxu0 0.0
    %1964 = vmatmul.mubr.f32.gmra.mxu0 %v1897
    %v1965 = vpop.f32.mrf.mxu0
    %v1966 = vadd.f32 0.0, %v1965
    %v1967 = vpop.f32.mrf.mxu0
    %1968 = vdwg.mxu0
    %v1970 = vrot.slane %v1887, 7
    %v1971 = vsel %vm152, %v1970, 0
    %1973 = vmatprep.subr.mxu0 0.0
    %1974 = vmatpush1.msra.mxu0 0.0
    %1975 = vmatprep.subr.mxu0 0.0
    %1976 = vmatpush1.msra.mxu0 0.0
    %1977 = vmatprep.subr.mxu0 0.0
    %1978 = vmatpush1.msra.mxu0 0.0
    %1979 = vmatprep.subr.mxu0 0.0
    %1980 = vmatpush1.msra.mxu0 0.0
    %1981 = vmatprep.subr.mxu0 0.0
    %1982 = vmatpush1.msra.mxu0 0.0
    %1983 = vmatprep.subr.mxu0 0.0
    %1984 = vmatpush1.msra.mxu0 0.0
    %1985 = vmatprep.subr.mxu0 0.0
    %1986 = vmatpush1.msra.mxu0 0.0
    %1987 = vmatprep.subr.mxu0 0.0
    %1988 = vmatpush1.msra.mxu0 0.0
    %1989 = vmatprep.subr.mxu0 0.0
    %1990 = vmatpush1.msra.mxu0 0.0
    %1991 = vmatprep.subr.mxu0 0.0
    %1992 = vmatpush1.msra.mxu0 0.0
    %1993 = vmatprep.subr.mxu0 0.0
    %1994 = vmatpush1.msra.mxu0 0.0
    %1995 = vmatprep.subr.mxu0 0.0
    %1996 = vmatpush1.msra.mxu0 0.0
    %1997 = vmatprep.subr.mxu0 0.0
    %1998 = vmatpush1.msra.mxu0 %v1891
    %1999 = vmatprep.subr.mxu0 0.0
    %2000 = vmatpush1.msra.mxu0 %v1890
    %2001 = vmatprep.subr.mxu0 0.0
    %2002 = vmatpush1.msra.mxu0 %v1889
    %2003 = vmatprep.subr.mxu0 0.0
    %2004 = vmatpush1.msra.mxu0 %v1888
    %2005 = vmatprep.subr.mxu0 0.0
    %2006 = vmatpush2.msra.mxu0 0.0
    %2007 = vmatprep.subr.mxu0 0.0
    %2008 = vmatpush2.msra.mxu0 0.0
    %2009 = vmatprep.subr.mxu0 0.0
    %2010 = vmatpush2.msra.mxu0 0.0
    %2011 = vmatprep.subr.mxu0 0.0
    %2012 = vmatpush2.msra.mxu0 0.0
    %2013 = vmatprep.subr.mxu0 0.0
    %2014 = vmatpush2.msra.mxu0 0.0
    %2015 = vmatprep.subr.mxu0 0.0
    %2016 = vmatpush2.msra.mxu0 0.0
    %2017 = vmatprep.subr.mxu0 0.0
    %2018 = vmatpush2.msra.mxu0 0.0
    %2019 = vmatprep.subr.mxu0 0.0
    %2020 = vmatpush2.msra.mxu0 0.0
    %2021 = vmatprep.subr.mxu0 0.0
    %2022 = vmatpush2.msra.mxu0 0.0
    %2023 = vmatprep.subr.mxu0 0.0
    %2024 = vmatpush2.msra.mxu0 0.0
    %2025 = vmatprep.subr.mxu0 0.0
    %2026 = vmatpush2.msra.mxu0 0.0
    %2027 = vmatprep.subr.mxu0 0.0
    %2028 = vmatpush2.msra.mxu0 0.0
    %2029 = vmatprep.subr.mxu0 0.0
    %2030 = vmatpush2.msra.mxu0 0.0
    %2031 = vmatprep.subr.mxu0 0.0
    %2032 = vmatpush2.msra.mxu0 0.0
    %2033 = vmatprep.subr.mxu0 0.0
    %2034 = vmatpush2.msra.mxu0 0.0
    %2035 = vmatprep.subr.mxu0 0.0
    %2036 = vmatpush2.msra.mxu0 0.0
    %2037 = vmatprep.mubr.f32.mxu0 0.0
    %2038 = vmatmul.mubr.f32.gmra.mxu0 %v1971
    %v2039 = vpop.f32.mrf.mxu0
    %v2040 = vadd.f32 %v1966, %v2039
    %v2041 = vpop.f32.mrf.mxu0
    %2042 = vdwg.mxu0
    %v2043 = vadd.f32 %v2040, %v381
    %v2044 = vtanh.pop %v2043
    %2045 = vst.msk [vmem:[#allocation2 + $0x7] sm:$0x1] %vm385, %v2044
    %v2046 = vld [vmem:[#allocation2] sm:$0xff]
    %v2047 = vld [vmem:[%s5] sm:$0xff]
    %v2048 = vld [vmem:[%s5 + $0x8] sm:$0xff]
    %v2049 = vld [vmem:[%s5 + $0x10] sm:$0xff]
    %v2050 = vld [vmem:[%s5 + $0x18] sm:$0xff]
    %v2051 = vld [vmem:[%s6] sm:$0x1]
    %v2053 = vlaneseq
    %v2054 = vshrl.u32 %v2053, 7
    %v2055 = vsub.s32 0, %v2054
    %v2056 = vrot.slane %v2051, %v2055
    %v2059 = vsel %vm152, %v2046, 0
    %2061 = vmatprep.subr.mxu0 0.0
    %2062 = vmatpush1.msra.mxu0 0.0
    %2063 = vmatprep.subr.mxu0 0.0
    %2064 = vmatpush1.msra.mxu0 0.0
    %2065 = vmatprep.subr.mxu0 0.0
    %2066 = vmatpush1.msra.mxu0 0.0
    %2067 = vmatprep.subr.mxu0 0.0
    %2068 = vmatpush1.msra.mxu0 0.0
    %2069 = vmatprep.subr.mxu0 0.0
    %2070 = vmatpush1.msra.mxu0 0.0
    %2071 = vmatprep.subr.mxu0 0.0
    %2072 = vmatpush1.msra.mxu0 0.0
    %2073 = vmatprep.subr.mxu0 0.0
    %2074 = vmatpush1.msra.mxu0 0.0
    %2075 = vmatprep.subr.mxu0 0.0
    %2076 = vmatpush1.msra.mxu0 0.0
    %2077 = vmatprep.subr.mxu0 0.0
    %2078 = vmatpush1.msra.mxu0 0.0
    %2079 = vmatprep.subr.mxu0 0.0
    %2080 = vmatpush1.msra.mxu0 0.0
    %2081 = vmatprep.subr.mxu0 0.0
    %2082 = vmatpush1.msra.mxu0 0.0
    %2083 = vmatprep.subr.mxu0 0.0
    %2084 = vmatpush1.msra.mxu0 0.0
    %2085 = vmatprep.subr.mxu0 0.0
    %2086 = vmatpush1.msra.mxu0 %v2050
    %2087 = vmatprep.subr.mxu0 0.0
    %2088 = vmatpush1.msra.mxu0 %v2049
    %2089 = vmatprep.subr.mxu0 0.0
    %2090 = vmatpush1.msra.mxu0 %v2048
    %2091 = vmatprep.subr.mxu0 0.0
    %2092 = vmatpush1.msra.mxu0 %v2047
    %2093 = vmatprep.subr.mxu0 0.0
    %2094 = vmatpush2.msra.mxu0 0.0
    %2095 = vmatprep.subr.mxu0 0.0
    %2096 = vmatpush2.msra.mxu0 0.0
    %2097 = vmatprep.subr.mxu0 0.0
    %2098 = vmatpush2.msra.mxu0 0.0
    %2099 = vmatprep.subr.mxu0 0.0
    %2100 = vmatpush2.msra.mxu0 0.0
    %2101 = vmatprep.subr.mxu0 0.0
    %2102 = vmatpush2.msra.mxu0 0.0
    %2103 = vmatprep.subr.mxu0 0.0
    %2104 = vmatpush2.msra.mxu0 0.0
    %2105 = vmatprep.subr.mxu0 0.0
    %2106 = vmatpush2.msra.mxu0 0.0
    %2107 = vmatprep.subr.mxu0 0.0
    %2108 = vmatpush2.msra.mxu0 0.0
    %2109 = vmatprep.subr.mxu0 0.0
    %2110 = vmatpush2.msra.mxu0 0.0
    %2111 = vmatprep.subr.mxu0 0.0
    %2112 = vmatpush2.msra.mxu0 0.0
    %2113 = vmatprep.subr.mxu0 0.0
    %2114 = vmatpush2.msra.mxu0 0.0
    %2115 = vmatprep.subr.mxu0 0.0
    %2116 = vmatpush2.msra.mxu0 0.0
    %2117 = vmatprep.subr.mxu0 0.0
    %2118 = vmatpush2.msra.mxu0 0.0
    %2119 = vmatprep.subr.mxu0 0.0
    %2120 = vmatpush2.msra.mxu0 0.0
    %2121 = vmatprep.subr.mxu0 0.0
    %2122 = vmatpush2.msra.mxu0 0.0
    %2123 = vmatprep.subr.mxu0 0.0
    %2124 = vmatpush2.msra.mxu0 0.0
    %2125 = vmatprep.mubr.f32.mxu0 0.0
    %2126 = vmatmul.mubr.f32.gmra.mxu0 %v2059
    %v2127 = vpop.f32.mrf.mxu0
    %v2128 = vadd.f32 %v2056, %v2127
    %v2129 = vpop.f32.mrf.mxu0
    %2130 = vdwg.mxu0
    %v2131 = vtanh.pop %v2128
    %vm2132 = vcmask 64512
    %2133 = vst.msk [vmem:[#allocation9] sm:$0xff] %vm2132, %v2131
    // Predicated region
    $region42: #{tpu_custom_call.1} parent=1 // pred_check
      _
    $region43: #{tpu_custom_call.1} parent=1 // pred_check_branch
      %2135 = sbr.rel (0) target = $region45
    $region44: #{tpu_custom_call.1} parent=1 // pred_region
      %s2137 = ssub.s32 128, 128
      %2138 = vsyncadd [#allocation5], %s2137
      %s2140 = sshll.u32 [#allocation9], 4
      %s2141 = int_to_ptr.vmem [resolvable:$true] %s2140
      %2143 = dma.vmem_to_hbm [thread:$0]  %s2141, 128, %s7, [#allocation5]
    $region45: #{tpu_custom_call.1} parent=1 // pred_fallthru
      _
    // Predicated region
    $region46: #{tpu_custom_call.1} parent=1 // pred_check
      _
    $region47: #{tpu_custom_call.1} parent=1 // pred_check_branch
      %2145 = sbr.rel (0) target = $region49
    $region48: #{tpu_custom_call.1} parent=1 // pred_region
      %2146 = dma.done [#allocation5], 128
    $region49: #{tpu_custom_call.1} parent=1 // pred_fallthru
      _
    %2147 = vsyncpa [#allocation4], 1
    %2148 = vsyncpa [#allocation7], 1
    %2149 = vsyncpa [#allocation5], 1

</llo_original>
